<compile_context>
chip_gen: v6e
topology: v6e:2x2x1
jax: 0.10.0
libtpu: 0.0.40
codegen_flags: <defaults>
</compile_context>

<pallas_src>
import functools

import jax
import jax.numpy as jnp
from jax.experimental import pallas as pl
from jax.experimental.pallas import tpu as pltpu


def _round_up(x: int, m: int) -> int:
    return ((x + m - 1) // m) * m


def _pad2d(x: jax.Array, rows: int, cols: int) -> jax.Array:
    out = jnp.zeros((rows, cols), x.dtype)
    return out.at[: x.shape[0], : x.shape[1]].set(x)


# ----------------------------------------------------------------------------
# Generation-aware VMEM budgets (v5e/v6e: 128 MiB physical, v7x: 64 MiB).
# ----------------------------------------------------------------------------
def _tpu_vmem_capacity_bytes() -> int:
    try:
        return int(pltpu.get_tpu_info().vmem_capacity_bytes)
    except Exception:
        return 64 * 1024 * 1024   # conservative default (v7x-sized)


_VMEM_CAPACITY = _tpu_vmem_capacity_bytes()
# Leave headroom for Mosaic internal scratch / bookkeeping.
_VMEM_LIMIT = max(32 << 20, _VMEM_CAPACITY - (16 << 20))
_FUSED_VMEM_BUDGET = _VMEM_LIMIT - (4 << 20)
# Budget for keeping the (double-buffered by default) bf16 E block resident in
# the fallback kernel.
_E_RESIDENT_BUDGET = max(8 << 20, _VMEM_LIMIT // 3)


# ----------------------------------------------------------------------------
# Kernel 1: fused multi-layer propagation (grid-less; everything VMEM-resident)
#   G (bf16), E0 (f32), out (f32) and the bf16 'cur' scratch all live in VMEM
#   for the whole kernel, single-buffered (no grid -> nothing to pipeline), so
#   G is read from HBM exactly once regardless of n_layers.
#   NOTE: on v7x this runs on a single TensorCore; it is still preferred where
#   it fits because the alternative re-reads G from HBM n_layers times.
# ----------------------------------------------------------------------------
def _fused_propagate_kernel(g_ref, e0_ref, out_ref, cur_ref, *, n_layers):
    cur_ref[...] = e0_ref[...].astype(jnp.bfloat16)
    out_ref[...] = e0_ref[...]
    for _ in range(n_layers):                      # n_layers is small & static
        nxt = jnp.dot(g_ref[...], cur_ref[...], preferred_element_type=jnp.float32)
        cur_ref[...] = nxt.astype(jnp.bfloat16)
        out_ref[...] = out_ref[...] + nxt
    out_ref[...] = out_ref[...] * (1.0 / float(n_layers + 1))


def fused_propagate(graph_bf16: jax.Array, e0: jax.Array, n_layers: int) -> jax.Array:
    n_pad, d_pad = e0.shape
    assert graph_bf16.shape == (n_pad, n_pad)
    kernel = functools.partial(_fused_propagate_kernel, n_layers=n_layers)
    return pl.pallas_call(
        kernel,
        out_shape=jax.ShapeDtypeStruct((n_pad, d_pad), jnp.float32),
        scratch_shapes=[pltpu.VMEM((n_pad, d_pad), jnp.bfloat16)],   # cur (bf16)
        compiler_params=pltpu.CompilerParams(vmem_limit_bytes=_VMEM_LIMIT),
    )(graph_bf16, e0)


def fused_vmem_estimate(n_pad: int, d_pad: int) -> int:
    # Single-buffered (grid-less kernel): G bf16 + E0 f32 + out f32 + cur bf16.
    return n_pad * n_pad * 2 + n_pad * d_pad * (4 + 4 + 2)


# ----------------------------------------------------------------------------
# Kernel 2: one LightGCN layer, K-tiled (fallback for large N)
#     nxt = G @ E        (bf16 x bf16 -> f32, accumulated in the resident
#                          output block across the K axis)
#     acc_out = (acc_in + nxt) * scale      (fused running-sum update; acc_in
#                                             is aliased to acc_out)
#   grid = (rows "parallel", K "arbitrary").  E is either fully resident in
#   VMEM (constant index map, sliced with pl.ds inside the kernel) or streamed
#   as K-slabs when too large.
# ----------------------------------------------------------------------------
def _gcn_layer_kernel(g_ref, e_ref, acc_in_ref, nxt_ref, acc_out_ref,
                      *, tk, e_resident, scale):
    k = pl.program_id(1)

    @pl.when(k == 0)
    def _():
        nxt_ref[...] = jnp.zeros_like(nxt_ref)

    if e_resident:
        start = pl.multiple_of(k * tk, tk)
        e_blk = e_ref[pl.ds(start, tk), :]
    else:
        e_blk = e_ref[...]

    nxt_ref[...] += jnp.dot(g_ref[...], e_blk, preferred_element_type=jnp.float32)

    @pl.when(k == pl.num_programs(1) - 1)
    def _():
        res = acc_in_ref[...] + nxt_ref[...]
        if scale != 1.0:
            res = res * scale
        acc_out_ref[...] = res


def gcn_layer_matmul(graph_bf16: jax.Array, emb_bf16: jax.Array, acc_f32: jax.Array,
                     *, tm: int, tk: int, e_resident: bool, scale: float):
    n_pad = graph_bf16.shape[0]
    d_pad = emb_bf16.shape[1]
    assert n_pad % tm == 0 and n_pad % tk == 0

    if e_resident:
        e_spec = pl.BlockSpec((n_pad, d_pad), lambda i, k: (0, 0))   # fetched once
    else:
        e_spec = pl.BlockSpec((tk, d_pad), lambda i, k: (k, 0))      # K-slab stream

    kernel = functools.partial(_gcn_layer_kernel, tk=tk,
                               e_resident=e_resident, scale=scale)
    nxt, acc_out = pl.pallas_call(
        kernel,
        out_shape=(jax.ShapeDtypeStruct((n_pad, d_pad), jnp.float32),
                   jax.ShapeDtypeStruct((n_pad, d_pad), jnp.float32)),
        grid_spec=pltpu.PrefetchScalarGridSpec(
            num_scalar_prefetch=0,
            grid=(n_pad // tm, n_pad // tk),
            in_specs=[
                pl.BlockSpec((tm, tk), lambda i, k: (i, k)),        # G tile (bf16)
                e_spec,                                             # E (bf16)
                pl.BlockSpec((tm, d_pad), lambda i, k: (i, 0)),     # running sum in
            ],
            out_specs=[
                pl.BlockSpec((tm, d_pad), lambda i, k: (i, 0)),     # new layer emb
                pl.BlockSpec((tm, d_pad), lambda i, k: (i, 0)),     # updated sum
            ],
        ),
        input_output_aliases={2: 1},    # acc_in aliased to acc_out (P8)
        compiler_params=pltpu.CompilerParams(
            dimension_semantics=("parallel", "arbitrary"),
            vmem_limit_bytes=_VMEM_LIMIT,
        ),
    )(graph_bf16, emb_bf16, acc_f32)
    return nxt, acc_out


# ----------------------------------------------------------------------------
# Kernel 3: forward() score  gamma[b] = sum_d u[b, d] * i[b, d]
#   Natural (B, d_pad) layout (no wrapper transposes / (D,B) pads); reduction
#   over the lane axis; output is (B_pad, 1) which is tiny (B*4 bytes).
# ----------------------------------------------------------------------------
def _score_kernel(u_ref, i_ref, o_ref):
    o_ref[...] = jnp.sum(u_ref[...] * i_ref[...], axis=1, keepdims=True)


def pairwise_score(users_emb: jax.Array, items_emb: jax.Array, *, tb: int = 512) -> jax.Array:
    b, d = users_emb.shape
    tb = min(tb, _round_up(b, 8))
    b_pad = _round_up(b, tb)
    if b_pad != b:
        users_emb = jnp.pad(users_emb, ((0, b_pad - b), (0, 0)))
        items_emb = jnp.pad(items_emb, ((0, b_pad - b), (0, 0)))
    out = pl.pallas_call(
        _score_kernel,
        out_shape=jax.ShapeDtypeStruct((b_pad, 1), jnp.float32),
        grid_spec=pltpu.PrefetchScalarGridSpec(
            num_scalar_prefetch=0,
            grid=(b_pad // tb,),
            in_specs=[
                pl.BlockSpec((tb, d), lambda i: (i, 0)),
                pl.BlockSpec((tb, d), lambda i: (i, 0)),
            ],
            out_specs=pl.BlockSpec((tb, 1), lambda i: (i, 0)),
        ),
        compiler_params=pltpu.CompilerParams(dimension_semantics=("parallel",)),
    )(users_emb, items_emb)
    return out[:b, 0]


# ----------------------------------------------------------------------------
# LightGCN model in JAX (parameters + synthetic graph built in-script)
# ----------------------------------------------------------------------------
class LightGCNJax:
    def __init__(self, num_users, num_items, latent_dim, n_layers, key):
        self.num_users = num_users
        self.num_items = num_items
        self.latent_dim = latent_dim
        self.n_layers = n_layers
        self.n = num_users + num_items
        self.n_pad = _round_up(self.n, 256)          # MXU/lane friendly graph dims
        self.d_pad = _round_up(latent_dim, 128)      # lane-dense embedding columns

        ku, ki, kg = jax.random.split(key, 3)
        # nn.init.normal_(std=0.1) on both embedding tables
        self.embedding_user = 0.1 * jax.random.normal(
            ku, (num_users, latent_dim), dtype=jnp.float32)
        self.embedding_item = 0.1 * jax.random.normal(
            ki, (num_items, latent_dim), dtype=jnp.float32)

        # Synthetic interaction matrix -> D^-1/2 A D^-1/2 normalized adjacency
        # (stand-in for dataset.getSparseGraph(); dense since it is synthetic).
        r = (jax.random.uniform(kg, (num_users, num_items)) < 0.1).astype(jnp.float32)
        adj = jnp.zeros((self.n, self.n), dtype=jnp.float32)
        adj = adj.at[:num_users, num_users:].set(r)
        adj = adj.at[num_users:, :num_users].set(r.T)
        deg = adj.sum(axis=1)
        d_inv_sqrt = jnp.where(deg > 0, jax.lax.rsqrt(jnp.maximum(deg, 1e-12)), 0.0)
        graph = adj * d_inv_sqrt[:, None] * d_inv_sqrt[None, :]
        # bf16 graph: deliberate numerics change (halves the dominant HBM stream);
        # mirrored in reference_forward; all matmuls still accumulate in f32.
        self.graph_bf16 = _pad2d(graph.astype(jnp.bfloat16), self.n_pad, self.n_pad)

        # Fused (graph-resident, single-buffered) path eligibility.
        self._fused_ok = (n_layers >= 1) and (
            fused_vmem_estimate(self.n_pad, self.d_pad) <= _FUSED_VMEM_BUDGET)

        # Fallback tile sizes (bigger tiles -> less E/G re-read + fewer grid steps).
        self.tm = max(t for t in (1024, 512, 256) if self.n_pad % t == 0)
        self.tk = max(t for t in (2048, 1024, 512, 256) if self.n_pad % t == 0)
        # Keep the bf16 E fully VMEM-resident in the fallback when modest
        # (x2 for the default double-buffering of its constant-index block).
        self._e_resident = (2 * self.n_pad * self.d_pad * 2) <= _E_RESIDENT_BUDGET

    def _padded_e0(self):
        all_emb = jnp.concatenate([self.embedding_user, self.embedding_item], axis=0)
        return _pad2d(all_emb, self.n_pad, self.d_pad)

    def _propagate(self, use_fused=None, e_resident=None):
        """Returns the padded mean-of-layers embedding (n_pad, d_pad) f32."""
        if use_fused is None:
            use_fused = self._fused_ok
        if e_resident is None:
            e_resident = self._e_resident
        e0 = self._padded_e0()
        if self.n_layers == 0:
            return e0
        if use_fused:
            return fused_propagate(self.graph_bf16, e0, self.n_layers)
        inv = 1.0 / float(self.n_layers + 1)
        acc = e0
        cur_bf16 = e0.astype(jnp.bfloat16)
        for layer in range(self.n_layers):
            last = layer == self.n_layers - 1
            nxt, acc = gcn_layer_matmul(
                self.graph_bf16, cur_bf16, acc,
                tm=self.tm, tk=self.tk, e_resident=e_resident,
                scale=inv if last else 1.0)
            if not last:
                cur_bf16 = nxt.astype(jnp.bfloat16)   # wrapper-side cast, once/layer
        return acc

    def computer(self, use_fused=None):
        light_pad = self._propagate(use_fused=use_fused)
        light = light_pad[: self.n, : self.latent_dim]
        return light[: self.num_users], light[self.num_users:]

    def forward(self, users, items, use_fused=None, e_resident=None):
        light_pad = self._propagate(use_fused=use_fused, e_resident=e_resident)
        users_emb = light_pad[users]                         # row gather (XLA glue)
        items_emb = light_pad[items + self.num_users]
        return pairwise_score(users_emb, items_emb)          # Pallas score kernel


# ----------------------------------------------------------------------------
# Pure-JAX reference mirroring the kernel numerics (bf16 graph, f32 accum)
# ----------------------------------------------------------------------------
def reference_forward(model: LightGCNJax, users, items):
    e0 = model._padded_e0()
    acc = e0
    cur = e0
    for _ in range(model.n_layers):
        nxt = jnp.dot(model.graph_bf16, cur.astype(jnp.bfloat16),
                      preferred_element_type=jnp.float32)
        acc = acc + nxt
        cur = nxt
    light = (acc * (1.0 / float(model.n_layers + 1)))[: model.n, : model.latent_dim]
    u = light[: model.num_users][users]
    i = light[model.num_users:][items]
    return jnp.sum(u * i, axis=1)


if __name__ == "__main__":
    key = jax.random.PRNGKey(0)
    num_users, num_items, latent_dim, n_layers = 64, 64, 32, 3

    model = LightGCNJax(num_users, num_items, latent_dim, n_layers, key)

    kb = jax.random.PRNGKey(1)
    ku, ki = jax.random.split(kb)
    batch = 8
    users = jax.random.randint(ku, (batch,), 0, num_users, dtype=jnp.int32)
    items = jax.random.randint(ki, (batch,), 0, num_items, dtype=jnp.int32)

    # Exercise all three propagation variants: fused graph-resident, K-tiled
    # with resident E, and K-tiled with streamed E.
    gamma_fused = jax.block_until_ready(model.forward(users, items, use_fused=True))
    gamma_res = jax.block_until_ready(
        model.forward(users, items, use_fused=False, e_resident=True))
    gamma_strm = jax.block_until_ready(
        model.forward(users, items, use_fused=False, e_resident=False))
    ref = reference_forward(model, users, items)

    for gamma in (gamma_fused, gamma_res, gamma_strm):
        assert gamma.shape == (batch,)
        assert jnp.allclose(gamma, ref, atol=1e-4, rtol=1e-3), (gamma, ref)

    print("KERNEL_OK")
</pallas_src>

<mosaic_0001>
module attributes {stable_mosaic.version = 11 : i64} {
  func.func @_fused_propagate_kernel(%arg0: memref<256x256xbf16, #tpu.memory_space<vmem>>, %arg1: memref<256x128xf32, #tpu.memory_space<vmem>>, %arg2: memref<256x128xf32, #tpu.memory_space<vmem>>, %arg3: memref<256x128xbf16, #tpu.memory_space<vmem>>) attributes {dimension_semantics = [], scalar_prefetch = 0 : i64, scratch_operands = 1 : i64, tpu.core_type = #tpu.core_type<tc>} {
    %c0 = arith.constant 0 : index
    %c0_0 = arith.constant 0 : index
    %0 = vector.load %arg1[%c0, %c0_0] : memref<256x128xf32, #tpu.memory_space<vmem>>, vector<256x128xf32>
    %1 = arith.truncf %0 : vector<256x128xf32> to vector<256x128xbf16>
    %c0_1 = arith.constant 0 : index
    %c0_2 = arith.constant 0 : index
    %2 = vector.load %arg3[%c0_1, %c0_2] : memref<256x128xbf16, #tpu.memory_space<vmem>>, vector<256x128xbf16>
    tpu.vector_store %arg3[%c0_1, %c0_2], %1 {strides = array<i32>} : memref<256x128xbf16, #tpu.memory_space<vmem>>, vector<256x128xbf16>,
    %c0_3 = arith.constant 0 : index
    %c0_4 = arith.constant 0 : index
    %3 = vector.load %arg1[%c0_3, %c0_4] : memref<256x128xf32, #tpu.memory_space<vmem>>, vector<256x128xf32>
    %c0_5 = arith.constant 0 : index
    %c0_6 = arith.constant 0 : index
    %4 = vector.load %arg2[%c0_5, %c0_6] : memref<256x128xf32, #tpu.memory_space<vmem>>, vector<256x128xf32>
    tpu.vector_store %arg2[%c0_5, %c0_6], %3 {strides = array<i32>} : memref<256x128xf32, #tpu.memory_space<vmem>>, vector<256x128xf32>,
    %c0_7 = arith.constant 0 : index
    %c0_8 = arith.constant 0 : index
    %5 = vector.load %arg0[%c0_7, %c0_8] : memref<256x256xbf16, #tpu.memory_space<vmem>>, vector<256x256xbf16>
    %c0_9 = arith.constant 0 : index
    %c0_10 = arith.constant 0 : index
    %6 = vector.load %arg3[%c0_9, %c0_10] : memref<256x128xbf16, #tpu.memory_space<vmem>>, vector<256x128xbf16>
    %cst = arith.constant dense<0.000000e+00> : vector<256x128xf32>
    %7 = tpu.matmul %5, %6, %cst {dimension_numbers = #tpu.dot_dimension_numbers<[1], [0], [0], [1], [0, 0, 1, 1], [], []>} : vector<256x256xbf16>, vector<256x128xbf16>, vector<256x128xf32> -> vector<256x128xf32>
    %8 = arith.truncf %7 : vector<256x128xf32> to vector<256x128xbf16>
    %c0_11 = arith.constant 0 : index
    %c0_12 = arith.constant 0 : index
    %9 = vector.load %arg3[%c0_11, %c0_12] : memref<256x128xbf16, #tpu.memory_space<vmem>>, vector<256x128xbf16>
    tpu.vector_store %arg3[%c0_11, %c0_12], %8 {strides = array<i32>} : memref<256x128xbf16, #tpu.memory_space<vmem>>, vector<256x128xbf16>,
    %c0_13 = arith.constant 0 : index
    %c0_14 = arith.constant 0 : index
    %10 = vector.load %arg2[%c0_13, %c0_14] : memref<256x128xf32, #tpu.memory_space<vmem>>, vector<256x128xf32>
    %11 = arith.addf %10, %7 : vector<256x128xf32>
    %c0_15 = arith.constant 0 : index
    %c0_16 = arith.constant 0 : index
    %12 = vector.load %arg2[%c0_15, %c0_16] : memref<256x128xf32, #tpu.memory_space<vmem>>, vector<256x128xf32>
    tpu.vector_store %arg2[%c0_15, %c0_16], %11 {strides = array<i32>} : memref<256x128xf32, #tpu.memory_space<vmem>>, vector<256x128xf32>,
    %c0_17 = arith.constant 0 : index
    %c0_18 = arith.constant 0 : index
    %13 = vector.load %arg0[%c0_17, %c0_18] : memref<256x256xbf16, #tpu.memory_space<vmem>>, vector<256x256xbf16>
    %c0_19 = arith.constant 0 : index
    %c0_20 = arith.constant 0 : index
    %14 = vector.load %arg3[%c0_19, %c0_20] : memref<256x128xbf16, #tpu.memory_space<vmem>>, vector<256x128xbf16>
    %cst_21 = arith.constant dense<0.000000e+00> : vector<256x128xf32>
    %15 = tpu.matmul %13, %14, %cst_21 {dimension_numbers = #tpu.dot_dimension_numbers<[1], [0], [0], [1], [0, 0, 1, 1], [], []>} : vector<256x256xbf16>, vector<256x128xbf16>, vector<256x128xf32> -> vector<256x128xf32>
    %16 = arith.truncf %15 : vector<256x128xf32> to vector<256x128xbf16>
    %c0_22 = arith.constant 0 : index
    %c0_23 = arith.constant 0 : index
    %17 = vector.load %arg3[%c0_22, %c0_23] : memref<256x128xbf16, #tpu.memory_space<vmem>>, vector<256x128xbf16>
    tpu.vector_store %arg3[%c0_22, %c0_23], %16 {strides = array<i32>} : memref<256x128xbf16, #tpu.memory_space<vmem>>, vector<256x128xbf16>,
    %c0_24 = arith.constant 0 : index
    %c0_25 = arith.constant 0 : index
    %18 = vector.load %arg2[%c0_24, %c0_25] : memref<256x128xf32, #tpu.memory_space<vmem>>, vector<256x128xf32>
    %19 = arith.addf %18, %15 : vector<256x128xf32>
    %c0_26 = arith.constant 0 : index
    %c0_27 = arith.constant 0 : index
    %20 = vector.load %arg2[%c0_26, %c0_27] : memref<256x128xf32, #tpu.memory_space<vmem>>, vector<256x128xf32>
    tpu.vector_store %arg2[%c0_26, %c0_27], %19 {strides = array<i32>} : memref<256x128xf32, #tpu.memory_space<vmem>>, vector<256x128xf32>,
    %c0_28 = arith.constant 0 : index
    %c0_29 = arith.constant 0 : index
    %21 = vector.load %arg0[%c0_28, %c0_29] : memref<256x256xbf16, #tpu.memory_space<vmem>>, vector<256x256xbf16>
    %c0_30 = arith.constant 0 : index
    %c0_31 = arith.constant 0 : index
    %22 = vector.load %arg3[%c0_30, %c0_31] : memref<256x128xbf16, #tpu.memory_space<vmem>>, vector<256x128xbf16>
    %cst_32 = arith.constant dense<0.000000e+00> : vector<256x128xf32>
    %23 = tpu.matmul %21, %22, %cst_32 {dimension_numbers = #tpu.dot_dimension_numbers<[1], [0], [0], [1], [0, 0, 1, 1], [], []>} : vector<256x256xbf16>, vector<256x128xbf16>, vector<256x128xf32> -> vector<256x128xf32>
    %24 = arith.truncf %23 : vector<256x128xf32> to vector<256x128xbf16>
    %c0_33 = arith.constant 0 : index
    %c0_34 = arith.constant 0 : index
    %25 = vector.load %arg3[%c0_33, %c0_34] : memref<256x128xbf16, #tpu.memory_space<vmem>>, vector<256x128xbf16>
    tpu.vector_store %arg3[%c0_33, %c0_34], %24 {strides = array<i32>} : memref<256x128xbf16, #tpu.memory_space<vmem>>, vector<256x128xbf16>,
    %c0_35 = arith.constant 0 : index
    %c0_36 = arith.constant 0 : index
    %26 = vector.load %arg2[%c0_35, %c0_36] : memref<256x128xf32, #tpu.memory_space<vmem>>, vector<256x128xf32>
    %27 = arith.addf %26, %23 : vector<256x128xf32>
    %c0_37 = arith.constant 0 : index
    %c0_38 = arith.constant 0 : index
    %28 = vector.load %arg2[%c0_37, %c0_38] : memref<256x128xf32, #tpu.memory_space<vmem>>, vector<256x128xf32>
    tpu.vector_store %arg2[%c0_37, %c0_38], %27 {strides = array<i32>} : memref<256x128xf32, #tpu.memory_space<vmem>>, vector<256x128xf32>,
    %c0_39 = arith.constant 0 : index
    %c0_40 = arith.constant 0 : index
    %29 = vector.load %arg2[%c0_39, %c0_40] : memref<256x128xf32, #tpu.memory_space<vmem>>, vector<256x128xf32>
    %cst_41 = arith.constant 2.500000e-01 : f32
    %30 = vector.broadcast %cst_41 : f32 to vector<256x128xf32>
    %31 = arith.mulf %29, %30 : vector<256x128xf32>
    %c0_42 = arith.constant 0 : index
    %c0_43 = arith.constant 0 : index
    %32 = vector.load %arg2[%c0_42, %c0_43] : memref<256x128xf32, #tpu.memory_space<vmem>>, vector<256x128xf32>
    tpu.vector_store %arg2[%c0_42, %c0_43], %31 {strides = array<i32>} : memref<256x128xf32, #tpu.memory_space<vmem>>, vector<256x128xf32>,
    return
  }
}

</mosaic_0001>

<llo_original>
// kernel: tpu_custom_call.1
$region0: #{tpu_custom_call.1}
  #allocation0 [shape = 'u32[]', space=smem, size = 0x4, offset = 0x4, fixed_abs, tag = 'smem constant byte address 0x4 - core index']
  #allocation1 [shape = 'u32[144,128]{1,0:T(1,128)}', space=vmem, size = 0x12000, scoped, tag = 'internal scratch']
  #allocation2 [shape = 'bf16[256,128]{1,0:T(8,128)(2,1)}', space=vmem, size = 0x10000, scoped, tag = 'scratch operand']
  %s0 = inlined_call_operand.hbm [shape: bf16[256,256], index: 0, kind: input, shape index: {}]
  %s1 = inlined_call_operand.hbm [shape: f32[256,128], index: 1, kind: input, shape index: {}]
  %s2 = inlined_call_operand.hbm [shape: f32[256,128], index: 2, kind: output, shape index: {}]
  %s3 = sld [smem:[#allocation0]]
  $region26: #{tpu_custom_call.1} parent=0
    _
  %s5 = ssub.s32 1, %s3
  %s6 = scalar_select 0, %s5, %s3
  $region1: #{tpu_custom_call.1} parent=0
    #allocation3 [shape = 'u8[131072]{0}', space=vmem, size = 0x20000, scoped, tag = 'input window, operand 0, single buffered']
    #allocation4 [shape = 's32[1]{0}', space=sflag, size = 0x4, scoped, tag = 'scoped memory for tpu_custom_call.1']
    #allocation5 [shape = 's32[1]{0}', space=sflag, size = 0x4, scoped, tag = 'scoped memory for tpu_custom_call.1']
    #allocation6 [shape = 'u8[131072]{0}', space=vmem, size = 0x20000, scoped, tag = 'input window, operand 1, single buffered']
    #allocation7 [shape = 's32[1]{0}', space=sflag, size = 0x4, scoped, tag = 'scoped memory for tpu_custom_call.1']
    #allocation8 [shape = 'u8[131072]{0}', space=vmem, size = 0x20000, scoped, tag = 'output window, operand 0, single buffered']
    %7 = vsyncpa [#allocation4], 0
    %8 = vsyncpa [#allocation7], 0
    %9 = vsyncpa [#allocation5], 0
    // Predicated region
    $region2: #{tpu_custom_call.1} parent=1 // pred_check
      _
    $region3: #{tpu_custom_call.1} parent=1 // pred_check_branch
      %11 = sbr.rel (0) target = $region5
    $region4: #{tpu_custom_call.1} parent=1 // pred_region
      %s13 = ssub.s32 4096, 4096
      %14 = vsyncadd [#allocation4], %s13
      %s15 = sshll.u32 [#allocation3], 4
      %s16 = int_to_ptr.vmem [resolvable:$true] %s15
      %21 = dma.hbm_to_vmem [thread:$0]  %s0, 4096, %s16, [#allocation4], 128, 128, 8
    $region5: #{tpu_custom_call.1} parent=1 // pred_fallthru
      _
    // Predicated region
    $region6: #{tpu_custom_call.1} parent=1 // pred_check
      _
    $region7: #{tpu_custom_call.1} parent=1 // pred_check_branch
      %23 = sbr.rel (0) target = $region9
    $region8: #{tpu_custom_call.1} parent=1 // pred_region
      %s25 = ssub.s32 4096, 4096
      %26 = vsyncadd [#allocation7], %s25
      %s27 = sshll.u32 [#allocation6], 4
      %s28 = int_to_ptr.vmem [resolvable:$true] %s27
      %33 = dma.hbm_to_vmem [thread:$0]  %s1, 4096, %s28, [#allocation7], 128, 128, 8
    $region9: #{tpu_custom_call.1} parent=1 // pred_fallthru
      _
    // Predicated region
    $region10: #{tpu_custom_call.1} parent=1 // pred_check
      _
    $region11: #{tpu_custom_call.1} parent=1 // pred_check_branch
      %35 = sbr.rel (0) target = $region13
    $region12: #{tpu_custom_call.1} parent=1 // pred_region
      %36 = dma.done [#allocation4], 4096
    $region13: #{tpu_custom_call.1} parent=1 // pred_fallthru
      _
    // Predicated region
    $region14: #{tpu_custom_call.1} parent=1 // pred_check
      _
    $region15: #{tpu_custom_call.1} parent=1 // pred_check_branch
      %38 = sbr.rel (0) target = $region17
    $region16: #{tpu_custom_call.1} parent=1 // pred_region
      %39 = dma.done [#allocation7], 4096
    $region17: #{tpu_custom_call.1} parent=1 // pred_fallthru
      _
    %v41 = vld [vmem:[#allocation6] sm:$0xff]
    %v42 = vld [vmem:[#allocation6 + $0x8] sm:$0xff]
    %v43 = vld [vmem:[#allocation6 + $0x10] sm:$0xff]
    %v44 = vld [vmem:[#allocation6 + $0x18] sm:$0xff]
    %v45 = vld [vmem:[#allocation6 + $0x20] sm:$0xff]
    %v46 = vld [vmem:[#allocation6 + $0x28] sm:$0xff]
    %v47 = vld [vmem:[#allocation6 + $0x30] sm:$0xff]
    %v48 = vld [vmem:[#allocation6 + $0x38] sm:$0xff]
    %v49 = vld [vmem:[#allocation6 + $0x40] sm:$0xff]
    %v50 = vld [vmem:[#allocation6 + $0x48] sm:$0xff]
    %v51 = vld [vmem:[#allocation6 + $0x50] sm:$0xff]
    %v52 = vld [vmem:[#allocation6 + $0x58] sm:$0xff]
    %v53 = vld [vmem:[#allocation6 + $0x60] sm:$0xff]
    %v54 = vld [vmem:[#allocation6 + $0x68] sm:$0xff]
    %v55 = vld [vmem:[#allocation6 + $0x70] sm:$0xff]
    %v56 = vld [vmem:[#allocation6 + $0x78] sm:$0xff]
    %v57 = vld [vmem:[#allocation6 + $0x80] sm:$0xff]
    %v58 = vld [vmem:[#allocation6 + $0x88] sm:$0xff]
    %v59 = vld [vmem:[#allocation6 + $0x90] sm:$0xff]
    %v60 = vld [vmem:[#allocation6 + $0x98] sm:$0xff]
    %v61 = vld [vmem:[#allocation6 + $0xa0] sm:$0xff]
    %v62 = vld [vmem:[#allocation6 + $0xa8] sm:$0xff]
    %v63 = vld [vmem:[#allocation6 + $0xb0] sm:$0xff]
    %v64 = vld [vmem:[#allocation6 + $0xb8] sm:$0xff]
    %v65 = vld [vmem:[#allocation6 + $0xc0] sm:$0xff]
    %v66 = vld [vmem:[#allocation6 + $0xc8] sm:$0xff]
    %v67 = vld [vmem:[#allocation6 + $0xd0] sm:$0xff]
    %v68 = vld [vmem:[#allocation6 + $0xd8] sm:$0xff]
    %v69 = vld [vmem:[#allocation6 + $0xe0] sm:$0xff]
    %v70 = vld [vmem:[#allocation6 + $0xe8] sm:$0xff]
    %v71 = vld [vmem:[#allocation6 + $0xf0] sm:$0xff]
    %v72 = vld [vmem:[#allocation6 + $0xf8] sm:$0xff]
    %v73 = vpack.c.bf16 %v42, %v41
    %v74 = vpack.c.bf16 %v44, %v43
    %v75 = vpack.c.bf16 %v46, %v45
    %v76 = vpack.c.bf16 %v48, %v47
    %v77 = vpack.c.bf16 %v50, %v49
    %v78 = vpack.c.bf16 %v52, %v51
    %v79 = vpack.c.bf16 %v54, %v53
    %v80 = vpack.c.bf16 %v56, %v55
    %v81 = vpack.c.bf16 %v58, %v57
    %v82 = vpack.c.bf16 %v60, %v59
    %v83 = vpack.c.bf16 %v62, %v61
    %v84 = vpack.c.bf16 %v64, %v63
    %v85 = vpack.c.bf16 %v66, %v65
    %v86 = vpack.c.bf16 %v68, %v67
    %v87 = vpack.c.bf16 %v70, %v69
    %v88 = vpack.c.bf16 %v72, %v71
    %v105 = vunpack.c.l.b16 %v73
    %v106 = vunpack.c.h.b16 %v73
    %v107 = vunpack.c.l.b16 %v74
    %v108 = vunpack.c.h.b16 %v74
    %v109 = vunpack.c.l.b16 %v75
    %v110 = vunpack.c.h.b16 %v75
    %v111 = vunpack.c.l.b16 %v76
    %v112 = vunpack.c.h.b16 %v76
    %v113 = vunpack.c.l.b16 %v77
    %v114 = vunpack.c.h.b16 %v77
    %v115 = vunpack.c.l.b16 %v78
    %v116 = vunpack.c.h.b16 %v78
    %v117 = vunpack.c.l.b16 %v79
    %v118 = vunpack.c.h.b16 %v79
    %v119 = vunpack.c.l.b16 %v80
    %v120 = vunpack.c.h.b16 %v80
    %v121 = vunpack.c.l.b16 %v81
    %v122 = vunpack.c.h.b16 %v81
    %v123 = vunpack.c.l.b16 %v82
    %v124 = vunpack.c.h.b16 %v82
    %v125 = vunpack.c.l.b16 %v83
    %v126 = vunpack.c.h.b16 %v83
    %v127 = vunpack.c.l.b16 %v84
    %v128 = vunpack.c.h.b16 %v84
    %v129 = vunpack.c.l.b16 %v85
    %v130 = vunpack.c.h.b16 %v85
    %v131 = vunpack.c.l.b16 %v86
    %v132 = vunpack.c.h.b16 %v86
    %v133 = vunpack.c.l.b16 %v87
    %v134 = vunpack.c.h.b16 %v87
    %v135 = vunpack.c.l.b16 %v88
    %v136 = vunpack.c.h.b16 %v88
    %v137 = vpack.c.b16 %v105, %v105
    %v138 = vpack.c.b16 %v106, %v106
    %v139 = vpack.c.b16 %v107, %v107
    %v140 = vpack.c.b16 %v108, %v108
    %v141 = vpack.c.b16 %v109, %v109
    %v142 = vpack.c.b16 %v110, %v110
    %v143 = vpack.c.b16 %v111, %v111
    %v144 = vpack.c.b16 %v112, %v112
    %v145 = vpack.c.b16 %v113, %v113
    %v146 = vpack.c.b16 %v114, %v114
    %v147 = vpack.c.b16 %v115, %v115
    %v148 = vpack.c.b16 %v116, %v116
    %v149 = vpack.c.b16 %v117, %v117
    %v150 = vpack.c.b16 %v118, %v118
    %v151 = vpack.c.b16 %v119, %v119
    %v152 = vpack.c.b16 %v120, %v120
    %v153 = vpack.c.b16 %v121, %v121
    %v154 = vpack.c.b16 %v122, %v122
    %v155 = vpack.c.b16 %v123, %v123
    %v156 = vpack.c.b16 %v124, %v124
    %v157 = vpack.c.b16 %v125, %v125
    %v158 = vpack.c.b16 %v126, %v126
    %v159 = vpack.c.b16 %v127, %v127
    %v160 = vpack.c.b16 %v128, %v128
    %v161 = vpack.c.b16 %v129, %v129
    %v162 = vpack.c.b16 %v130, %v130
    %v163 = vpack.c.b16 %v131, %v131
    %v164 = vpack.c.b16 %v132, %v132
    %v165 = vpack.c.b16 %v133, %v133
    %v166 = vpack.c.b16 %v134, %v134
    %v167 = vpack.c.b16 %v135, %v135
    %v168 = vpack.c.b16 %v136, %v136
    %201 = vst [vmem:[#allocation2] sm:$0xf] %v137
    %202 = vst [vmem:[#allocation2 + $0x4] sm:$0xf] %v138
    %203 = vst [vmem:[#allocation2 + $0x8] sm:$0xf] %v139
    %204 = vst [vmem:[#allocation2 + $0xc] sm:$0xf] %v140
    %205 = vst [vmem:[#allocation2 + $0x10] sm:$0xf] %v141
    %206 = vst [vmem:[#allocation2 + $0x14] sm:$0xf] %v142
    %207 = vst [vmem:[#allocation2 + $0x18] sm:$0xf] %v143
    %208 = vst [vmem:[#allocation2 + $0x1c] sm:$0xf] %v144
    %209 = vst [vmem:[#allocation2 + $0x20] sm:$0xf] %v145
    %210 = vst [vmem:[#allocation2 + $0x24] sm:$0xf] %v146
    %211 = vst [vmem:[#allocation2 + $0x28] sm:$0xf] %v147
    %212 = vst [vmem:[#allocation2 + $0x2c] sm:$0xf] %v148
    %213 = vst [vmem:[#allocation2 + $0x30] sm:$0xf] %v149
    %214 = vst [vmem:[#allocation2 + $0x34] sm:$0xf] %v150
    %215 = vst [vmem:[#allocation2 + $0x38] sm:$0xf] %v151
    %216 = vst [vmem:[#allocation2 + $0x3c] sm:$0xf] %v152
    %217 = vst [vmem:[#allocation2 + $0x40] sm:$0xf] %v153
    %218 = vst [vmem:[#allocation2 + $0x44] sm:$0xf] %v154
    %219 = vst [vmem:[#allocation2 + $0x48] sm:$0xf] %v155
    %220 = vst [vmem:[#allocation2 + $0x4c] sm:$0xf] %v156
    %221 = vst [vmem:[#allocation2 + $0x50] sm:$0xf] %v157
    %222 = vst [vmem:[#allocation2 + $0x54] sm:$0xf] %v158
    %223 = vst [vmem:[#allocation2 + $0x58] sm:$0xf] %v159
    %224 = vst [vmem:[#allocation2 + $0x5c] sm:$0xf] %v160
    %225 = vst [vmem:[#allocation2 + $0x60] sm:$0xf] %v161
    %226 = vst [vmem:[#allocation2 + $0x64] sm:$0xf] %v162
    %227 = vst [vmem:[#allocation2 + $0x68] sm:$0xf] %v163
    %228 = vst [vmem:[#allocation2 + $0x6c] sm:$0xf] %v164
    %229 = vst [vmem:[#allocation2 + $0x70] sm:$0xf] %v165
    %230 = vst [vmem:[#allocation2 + $0x74] sm:$0xf] %v166
    %231 = vst [vmem:[#allocation2 + $0x78] sm:$0xf] %v167
    %232 = vst [vmem:[#allocation2 + $0x7c] sm:$0xf] %v168
    %v233 = vld [vmem:[#allocation6] sm:$0xff]
    %v234 = vld [vmem:[#allocation6 + $0x8] sm:$0xff]
    %v235 = vld [vmem:[#allocation6 + $0x10] sm:$0xff]
    %v236 = vld [vmem:[#allocation6 + $0x18] sm:$0xff]
    %v237 = vld [vmem:[#allocation6 + $0x20] sm:$0xff]
    %v238 = vld [vmem:[#allocation6 + $0x28] sm:$0xff]
    %v239 = vld [vmem:[#allocation6 + $0x30] sm:$0xff]
    %v240 = vld [vmem:[#allocation6 + $0x38] sm:$0xff]
    %v241 = vld [vmem:[#allocation6 + $0x40] sm:$0xff]
    %v242 = vld [vmem:[#allocation6 + $0x48] sm:$0xff]
    %v243 = vld [vmem:[#allocation6 + $0x50] sm:$0xff]
    %v244 = vld [vmem:[#allocation6 + $0x58] sm:$0xff]
    %v245 = vld [vmem:[#allocation6 + $0x60] sm:$0xff]
    %v246 = vld [vmem:[#allocation6 + $0x68] sm:$0xff]
    %v247 = vld [vmem:[#allocation6 + $0x70] sm:$0xff]
    %v248 = vld [vmem:[#allocation6 + $0x78] sm:$0xff]
    %v249 = vld [vmem:[#allocation6 + $0x80] sm:$0xff]
    %v250 = vld [vmem:[#allocation6 + $0x88] sm:$0xff]
    %v251 = vld [vmem:[#allocation6 + $0x90] sm:$0xff]
    %v252 = vld [vmem:[#allocation6 + $0x98] sm:$0xff]
    %v253 = vld [vmem:[#allocation6 + $0xa0] sm:$0xff]
    %v254 = vld [vmem:[#allocation6 + $0xa8] sm:$0xff]
    %v255 = vld [vmem:[#allocation6 + $0xb0] sm:$0xff]
    %v256 = vld [vmem:[#allocation6 + $0xb8] sm:$0xff]
    %v257 = vld [vmem:[#allocation6 + $0xc0] sm:$0xff]
    %v258 = vld [vmem:[#allocation6 + $0xc8] sm:$0xff]
    %v259 = vld [vmem:[#allocation6 + $0xd0] sm:$0xff]
    %v260 = vld [vmem:[#allocation6 + $0xd8] sm:$0xff]
    %v261 = vld [vmem:[#allocation6 + $0xe0] sm:$0xff]
    %v262 = vld [vmem:[#allocation6 + $0xe8] sm:$0xff]
    %v263 = vld [vmem:[#allocation6 + $0xf0] sm:$0xff]
    %v264 = vld [vmem:[#allocation6 + $0xf8] sm:$0xff]
    %265 = vst [vmem:[#allocation8] sm:$0xff] %v233
    %266 = vst [vmem:[#allocation8 + $0x8] sm:$0xff] %v234
    %267 = vst [vmem:[#allocation8 + $0x10] sm:$0xff] %v235
    %268 = vst [vmem:[#allocation8 + $0x18] sm:$0xff] %v236
    %269 = vst [vmem:[#allocation8 + $0x20] sm:$0xff] %v237
    %270 = vst [vmem:[#allocation8 + $0x28] sm:$0xff] %v238
    %271 = vst [vmem:[#allocation8 + $0x30] sm:$0xff] %v239
    %272 = vst [vmem:[#allocation8 + $0x38] sm:$0xff] %v240
    %273 = vst [vmem:[#allocation8 + $0x40] sm:$0xff] %v241
    %274 = vst [vmem:[#allocation8 + $0x48] sm:$0xff] %v242
    %275 = vst [vmem:[#allocation8 + $0x50] sm:$0xff] %v243
    %276 = vst [vmem:[#allocation8 + $0x58] sm:$0xff] %v244
    %277 = vst [vmem:[#allocation8 + $0x60] sm:$0xff] %v245
    %278 = vst [vmem:[#allocation8 + $0x68] sm:$0xff] %v246
    %279 = vst [vmem:[#allocation8 + $0x70] sm:$0xff] %v247
    %280 = vst [vmem:[#allocation8 + $0x78] sm:$0xff] %v248
    %281 = vst [vmem:[#allocation8 + $0x80] sm:$0xff] %v249
    %282 = vst [vmem:[#allocation8 + $0x88] sm:$0xff] %v250
    %283 = vst [vmem:[#allocation8 + $0x90] sm:$0xff] %v251
    %284 = vst [vmem:[#allocation8 + $0x98] sm:$0xff] %v252
    %285 = vst [vmem:[#allocation8 + $0xa0] sm:$0xff] %v253
    %286 = vst [vmem:[#allocation8 + $0xa8] sm:$0xff] %v254
    %287 = vst [vmem:[#allocation8 + $0xb0] sm:$0xff] %v255
    %288 = vst [vmem:[#allocation8 + $0xb8] sm:$0xff] %v256
    %289 = vst [vmem:[#allocation8 + $0xc0] sm:$0xff] %v257
    %290 = vst [vmem:[#allocation8 + $0xc8] sm:$0xff] %v258
    %291 = vst [vmem:[#allocation8 + $0xd0] sm:$0xff] %v259
    %292 = vst [vmem:[#allocation8 + $0xd8] sm:$0xff] %v260
    %293 = vst [vmem:[#allocation8 + $0xe0] sm:$0xff] %v261
    %294 = vst [vmem:[#allocation8 + $0xe8] sm:$0xff] %v262
    %295 = vst [vmem:[#allocation8 + $0xf0] sm:$0xff] %v263
    %296 = vst [vmem:[#allocation8 + $0xf8] sm:$0xff] %v264
    %v297 = vld [vmem:[#allocation3] sm:$0xff]
    %v298 = vld [vmem:[#allocation3 + $0x8] sm:$0xff]
    %v299 = vld [vmem:[#allocation3 + $0x10] sm:$0xff]
    %v300 = vld [vmem:[#allocation3 + $0x18] sm:$0xff]
    %v301 = vld [vmem:[#allocation3 + $0x20] sm:$0xff]
    %v302 = vld [vmem:[#allocation3 + $0x28] sm:$0xff]
    %v303 = vld [vmem:[#allocation3 + $0x30] sm:$0xff]
    %v304 = vld [vmem:[#allocation3 + $0x38] sm:$0xff]
    %v305 = vld [vmem:[#allocation3 + $0x40] sm:$0xff]
    %v306 = vld [vmem:[#allocation3 + $0x48] sm:$0xff]
    %v307 = vld [vmem:[#allocation3 + $0x50] sm:$0xff]
    %v308 = vld [vmem:[#allocation3 + $0x58] sm:$0xff]
    %v309 = vld [vmem:[#allocation3 + $0x60] sm:$0xff]
    %v310 = vld [vmem:[#allocation3 + $0x68] sm:$0xff]
    %v311 = vld [vmem:[#allocation3 + $0x70] sm:$0xff]
    %v312 = vld [vmem:[#allocation3 + $0x78] sm:$0xff]
    %v313 = vld [vmem:[#allocation3 + $0x80] sm:$0xff]
    %v314 = vld [vmem:[#allocation3 + $0x88] sm:$0xff]
    %v315 = vld [vmem:[#allocation3 + $0x90] sm:$0xff]
    %v316 = vld [vmem:[#allocation3 + $0x98] sm:$0xff]
    %v317 = vld [vmem:[#allocation3 + $0xa0] sm:$0xff]
    %v318 = vld [vmem:[#allocation3 + $0xa8] sm:$0xff]
    %v319 = vld [vmem:[#allocation3 + $0xb0] sm:$0xff]
    %v320 = vld [vmem:[#allocation3 + $0xb8] sm:$0xff]
    %v321 = vld [vmem:[#allocation3 + $0xc0] sm:$0xff]
    %v322 = vld [vmem:[#allocation3 + $0xc8] sm:$0xff]
    %v323 = vld [vmem:[#allocation3 + $0xd0] sm:$0xff]
    %v324 = vld [vmem:[#allocation3 + $0xd8] sm:$0xff]
    %v325 = vld [vmem:[#allocation3 + $0xe0] sm:$0xff]
    %v326 = vld [vmem:[#allocation3 + $0xe8] sm:$0xff]
    %v327 = vld [vmem:[#allocation3 + $0xf0] sm:$0xff]
    %v328 = vld [vmem:[#allocation3 + $0xf8] sm:$0xff]
    %v329 = vld [vmem:[#allocation2] sm:$0xf]
    %v330 = vld [vmem:[#allocation2 + $0x4] sm:$0xf]
    %v331 = vld [vmem:[#allocation2 + $0x8] sm:$0xf]
    %v332 = vld [vmem:[#allocation2 + $0xc] sm:$0xf]
    %v333 = vld [vmem:[#allocation2 + $0x10] sm:$0xf]
    %v334 = vld [vmem:[#allocation2 + $0x14] sm:$0xf]
    %v335 = vld [vmem:[#allocation2 + $0x18] sm:$0xf]
    %v336 = vld [vmem:[#allocation2 + $0x1c] sm:$0xf]
    %v337 = vld [vmem:[#allocation2 + $0x20] sm:$0xf]
    %v338 = vld [vmem:[#allocation2 + $0x24] sm:$0xf]
    %v339 = vld [vmem:[#allocation2 + $0x28] sm:$0xf]
    %v340 = vld [vmem:[#allocation2 + $0x2c] sm:$0xf]
    %v341 = vld [vmem:[#allocation2 + $0x30] sm:$0xf]
    %v342 = vld [vmem:[#allocation2 + $0x34] sm:$0xf]
    %v343 = vld [vmem:[#allocation2 + $0x38] sm:$0xf]
    %v344 = vld [vmem:[#allocation2 + $0x3c] sm:$0xf]
    %v345 = vld [vmem:[#allocation2 + $0x40] sm:$0xf]
    %v346 = vld [vmem:[#allocation2 + $0x44] sm:$0xf]
    %v347 = vld [vmem:[#allocation2 + $0x48] sm:$0xf]
    %v348 = vld [vmem:[#allocation2 + $0x4c] sm:$0xf]
    %v349 = vld [vmem:[#allocation2 + $0x50] sm:$0xf]
    %v350 = vld [vmem:[#allocation2 + $0x54] sm:$0xf]
    %v351 = vld [vmem:[#allocation2 + $0x58] sm:$0xf]
    %v352 = vld [vmem:[#allocation2 + $0x5c] sm:$0xf]
    %v353 = vld [vmem:[#allocation2 + $0x60] sm:$0xf]
    %v354 = vld [vmem:[#allocation2 + $0x64] sm:$0xf]
    %v355 = vld [vmem:[#allocation2 + $0x68] sm:$0xf]
    %v356 = vld [vmem:[#allocation2 + $0x6c] sm:$0xf]
    %v357 = vld [vmem:[#allocation2 + $0x70] sm:$0xf]
    %v358 = vld [vmem:[#allocation2 + $0x74] sm:$0xf]
    %v359 = vld [vmem:[#allocation2 + $0x78] sm:$0xf]
    %v360 = vld [vmem:[#allocation2 + $0x7c] sm:$0xf]
    %v393 = vunpack.c.l.b16 %v297
    %v394 = vunpack.c.h.b16 %v297
    %v395 = vunpack.c.l.b16 %v298
    %v396 = vunpack.c.h.b16 %v298
    %v397 = vunpack.c.l.b16 %v299
    %v398 = vunpack.c.h.b16 %v299
    %v399 = vunpack.c.l.b16 %v300
    %v400 = vunpack.c.h.b16 %v300
    %v401 = vunpack.c.l.b16 %v301
    %v402 = vunpack.c.h.b16 %v301
    %v403 = vunpack.c.l.b16 %v302
    %v404 = vunpack.c.h.b16 %v302
    %v405 = vunpack.c.l.b16 %v303
    %v406 = vunpack.c.h.b16 %v303
    %v407 = vunpack.c.l.b16 %v304
    %v408 = vunpack.c.h.b16 %v304
    %v409 = vunpack.c.l.b16 %v305
    %v410 = vunpack.c.h.b16 %v305
    %v411 = vunpack.c.l.b16 %v306
    %v412 = vunpack.c.h.b16 %v306
    %v413 = vunpack.c.l.b16 %v307
    %v414 = vunpack.c.h.b16 %v307
    %v415 = vunpack.c.l.b16 %v308
    %v416 = vunpack.c.h.b16 %v308
    %v417 = vunpack.c.l.b16 %v309
    %v418 = vunpack.c.h.b16 %v309
    %v419 = vunpack.c.l.b16 %v310
    %v420 = vunpack.c.h.b16 %v310
    %v421 = vunpack.c.l.b16 %v311
    %v422 = vunpack.c.h.b16 %v311
    %v423 = vunpack.c.l.b16 %v312
    %v424 = vunpack.c.h.b16 %v312
    %v425 = vunpack.c.l.b16 %v313
    %v426 = vunpack.c.h.b16 %v313
    %v427 = vunpack.c.l.b16 %v314
    %v428 = vunpack.c.h.b16 %v314
    %v429 = vunpack.c.l.b16 %v315
    %v430 = vunpack.c.h.b16 %v315
    %v431 = vunpack.c.l.b16 %v316
    %v432 = vunpack.c.h.b16 %v316
    %v433 = vunpack.c.l.b16 %v317
    %v434 = vunpack.c.h.b16 %v317
    %v435 = vunpack.c.l.b16 %v318
    %v436 = vunpack.c.h.b16 %v318
    %v437 = vunpack.c.l.b16 %v319
    %v438 = vunpack.c.h.b16 %v319
    %v439 = vunpack.c.l.b16 %v320
    %v440 = vunpack.c.h.b16 %v320
    %v441 = vunpack.c.l.b16 %v321
    %v442 = vunpack.c.h.b16 %v321
    %v443 = vunpack.c.l.b16 %v322
    %v444 = vunpack.c.h.b16 %v322
    %v445 = vunpack.c.l.b16 %v323
    %v446 = vunpack.c.h.b16 %v323
    %v447 = vunpack.c.l.b16 %v324
    %v448 = vunpack.c.h.b16 %v324
    %v449 = vunpack.c.l.b16 %v325
    %v450 = vunpack.c.h.b16 %v325
    %v451 = vunpack.c.l.b16 %v326
    %v452 = vunpack.c.h.b16 %v326
    %v453 = vunpack.c.l.b16 %v327
    %v454 = vunpack.c.h.b16 %v327
    %v455 = vunpack.c.l.b16 %v328
    %v456 = vunpack.c.h.b16 %v328
    %v457 = vpack.c.b16 %v395, %v393
    %v458 = vpack.c.b16 %v396, %v394
    %v459 = vpack.c.b16 %v399, %v397
    %v460 = vpack.c.b16 %v400, %v398
    %v461 = vpack.c.b16 %v403, %v401
    %v462 = vpack.c.b16 %v404, %v402
    %v463 = vpack.c.b16 %v407, %v405
    %v464 = vpack.c.b16 %v408, %v406
    %v465 = vpack.c.b16 %v411, %v409
    %v466 = vpack.c.b16 %v412, %v410
    %v467 = vpack.c.b16 %v415, %v413
    %v468 = vpack.c.b16 %v416, %v414
    %v469 = vpack.c.b16 %v419, %v417
    %v470 = vpack.c.b16 %v420, %v418
    %v471 = vpack.c.b16 %v423, %v421
    %v472 = vpack.c.b16 %v424, %v422
    %v473 = vpack.c.b16 %v427, %v425
    %v474 = vpack.c.b16 %v428, %v426
    %v475 = vpack.c.b16 %v431, %v429
    %v476 = vpack.c.b16 %v432, %v430
    %v477 = vpack.c.b16 %v435, %v433
    %v478 = vpack.c.b16 %v436, %v434
    %v479 = vpack.c.b16 %v439, %v437
    %v480 = vpack.c.b16 %v440, %v438
    %v481 = vpack.c.b16 %v443, %v441
    %v482 = vpack.c.b16 %v444, %v442
    %v483 = vpack.c.b16 %v447, %v445
    %v484 = vpack.c.b16 %v448, %v446
    %v485 = vpack.c.b16 %v451, %v449
    %v486 = vpack.c.b16 %v452, %v450
    %v487 = vpack.c.b16 %v455, %v453
    %v488 = vpack.c.b16 %v456, %v454
    %v553 = vunpack.c.l.b16 %v329
    %v554 = vunpack.c.l.b16 %v330
    %v555 = vunpack.c.l.b16 %v331
    %v556 = vunpack.c.l.b16 %v332
    %v557 = vunpack.c.l.b16 %v333
    %v558 = vunpack.c.l.b16 %v334
    %v559 = vunpack.c.l.b16 %v335
    %v560 = vunpack.c.l.b16 %v336
    %v561 = vunpack.c.l.b16 %v337
    %v562 = vunpack.c.l.b16 %v338
    %v563 = vunpack.c.l.b16 %v339
    %v564 = vunpack.c.l.b16 %v340
    %v565 = vunpack.c.l.b16 %v341
    %v566 = vunpack.c.l.b16 %v342
    %v567 = vunpack.c.l.b16 %v343
    %v568 = vunpack.c.l.b16 %v344
    %v569 = vunpack.c.l.b16 %v345
    %v570 = vunpack.c.l.b16 %v346
    %v571 = vunpack.c.l.b16 %v347
    %v572 = vunpack.c.l.b16 %v348
    %v573 = vunpack.c.l.b16 %v349
    %v574 = vunpack.c.l.b16 %v350
    %v575 = vunpack.c.l.b16 %v351
    %v576 = vunpack.c.l.b16 %v352
    %v577 = vunpack.c.l.b16 %v353
    %v578 = vunpack.c.l.b16 %v354
    %v579 = vunpack.c.l.b16 %v355
    %v580 = vunpack.c.l.b16 %v356
    %v581 = vunpack.c.l.b16 %v357
    %v582 = vunpack.c.l.b16 %v358
    %v583 = vunpack.c.l.b16 %v359
    %v584 = vunpack.c.l.b16 %v360
    %v585 = vpack.c.b16 %v554, %v553
    %v586 = vpack.c.b16 %v556, %v555
    %v587 = vpack.c.b16 %v558, %v557
    %v588 = vpack.c.b16 %v560, %v559
    %v589 = vpack.c.b16 %v562, %v561
    %v590 = vpack.c.b16 %v564, %v563
    %v591 = vpack.c.b16 %v566, %v565
    %v592 = vpack.c.b16 %v568, %v567
    %v593 = vpack.c.b16 %v570, %v569
    %v594 = vpack.c.b16 %v572, %v571
    %v595 = vpack.c.b16 %v574, %v573
    %v596 = vpack.c.b16 %v576, %v575
    %v597 = vpack.c.b16 %v578, %v577
    %v598 = vpack.c.b16 %v580, %v579
    %v599 = vpack.c.b16 %v582, %v581
    %v600 = vpack.c.b16 %v584, %v583
    %617 = vmatprep.subr.bf16.mxu0 0
    %618 = vmatpush1.bf16.msra.mxu0 %v592
    %619 = vmatprep.subr.bf16.mxu0 0
    %620 = vmatpush1.bf16.msra.mxu0 %v591
    %621 = vmatprep.subr.bf16.mxu0 0
    %622 = vmatpush1.bf16.msra.mxu0 %v590
    %623 = vmatprep.subr.bf16.mxu0 0
    %624 = vmatpush1.bf16.msra.mxu0 %v589
    %625 = vmatprep.subr.bf16.mxu0 0
    %626 = vmatpush1.bf16.msra.mxu0 %v588
    %627 = vmatprep.subr.bf16.mxu0 0
    %628 = vmatpush1.bf16.msra.mxu0 %v587
    %629 = vmatprep.subr.bf16.mxu0 0
    %630 = vmatpush1.bf16.msra.mxu0 %v586
    %631 = vmatprep.subr.bf16.mxu0 0
    %632 = vmatpush1.bf16.msra.mxu0 %v585
    %633 = vmatprep.subr.bf16.mxu0 0
    %634 = vmatpush2.bf16.msra.mxu0 %v600
    %635 = vmatprep.subr.bf16.mxu0 0
    %636 = vmatpush2.bf16.msra.mxu0 %v599
    %637 = vmatprep.subr.bf16.mxu0 0
    %638 = vmatpush2.bf16.msra.mxu0 %v598
    %639 = vmatprep.subr.bf16.mxu0 0
    %640 = vmatpush2.bf16.msra.mxu0 %v597
    %641 = vmatprep.subr.bf16.mxu0 0
    %642 = vmatpush2.bf16.msra.mxu0 %v596
    %643 = vmatprep.subr.bf16.mxu0 0
    %644 = vmatpush2.bf16.msra.mxu0 %v595
    %645 = vmatprep.subr.bf16.mxu0 0
    %646 = vmatpush2.bf16.msra.mxu0 %v594
    %647 = vmatprep.subr.bf16.mxu0 0
    %648 = vmatpush2.bf16.msra.mxu0 %v593
    %649 = vmatprep.mubr.bf16.mxu0 %v458
    %650 = vmatmul.mubr.bf16.gmra.mxu0 %v457
    %v651 = vpop.f32.mrf.mxu0
    %v652 = vadd.f32 0.0, %v651
    %v653 = vpop.f32.mrf.mxu0
    %v654 = vpop.f32.mrf.mxu0
    %v655 = vadd.f32 0.0, %v654
    %v656 = vpop.f32.mrf.mxu0
    %657 = vmatprep.mubr.bf16.mxu0 %v460
    %658 = vmatmul.mubr.bf16.gmra.mxu0 %v459
    %v659 = vpop.f32.mrf.mxu0
    %v660 = vadd.f32 0.0, %v659
    %v661 = vpop.f32.mrf.mxu0
    %v662 = vpop.f32.mrf.mxu0
    %v663 = vadd.f32 0.0, %v662
    %v664 = vpop.f32.mrf.mxu0
    %665 = vmatprep.mubr.bf16.mxu0 %v462
    %666 = vmatmul.mubr.bf16.gmra.mxu0 %v461
    %v667 = vpop.f32.mrf.mxu0
    %v668 = vadd.f32 0.0, %v667
    %v669 = vpop.f32.mrf.mxu0
    %v670 = vpop.f32.mrf.mxu0
    %v671 = vadd.f32 0.0, %v670
    %v672 = vpop.f32.mrf.mxu0
    %673 = vmatprep.mubr.bf16.mxu0 %v464
    %674 = vmatmul.mubr.bf16.gmra.mxu0 %v463
    %v675 = vpop.f32.mrf.mxu0
    %v676 = vadd.f32 0.0, %v675
    %v677 = vpop.f32.mrf.mxu0
    %v678 = vpop.f32.mrf.mxu0
    %v679 = vadd.f32 0.0, %v678
    %v680 = vpop.f32.mrf.mxu0
    %681 = vmatprep.mubr.bf16.mxu0 %v466
    %682 = vmatmul.mubr.bf16.gmra.mxu0 %v465
    %v683 = vpop.f32.mrf.mxu0
    %v684 = vadd.f32 0.0, %v683
    %v685 = vpop.f32.mrf.mxu0
    %v686 = vpop.f32.mrf.mxu0
    %v687 = vadd.f32 0.0, %v686
    %v688 = vpop.f32.mrf.mxu0
    %689 = vmatprep.mubr.bf16.mxu0 %v468
    %690 = vmatmul.mubr.bf16.gmra.mxu0 %v467
    %v691 = vpop.f32.mrf.mxu0
    %v692 = vadd.f32 0.0, %v691
    %v693 = vpop.f32.mrf.mxu0
    %v694 = vpop.f32.mrf.mxu0
    %v695 = vadd.f32 0.0, %v694
    %v696 = vpop.f32.mrf.mxu0
    %697 = vmatprep.mubr.bf16.mxu0 %v470
    %698 = vmatmul.mubr.bf16.gmra.mxu0 %v469
    %v699 = vpop.f32.mrf.mxu0
    %v700 = vadd.f32 0.0, %v699
    %v701 = vpop.f32.mrf.mxu0
    %v702 = vpop.f32.mrf.mxu0
    %v703 = vadd.f32 0.0, %v702
    %v704 = vpop.f32.mrf.mxu0
    %705 = vmatprep.mubr.bf16.mxu0 %v472
    %706 = vmatmul.mubr.bf16.gmra.mxu0 %v471
    %v707 = vpop.f32.mrf.mxu0
    %v708 = vadd.f32 0.0, %v707
    %v709 = vpop.f32.mrf.mxu0
    %v710 = vpop.f32.mrf.mxu0
    %v711 = vadd.f32 0.0, %v710
    %v712 = vpop.f32.mrf.mxu0
    %713 = vmatprep.mubr.bf16.mxu0 %v474
    %714 = vmatmul.mubr.bf16.gmra.mxu0 %v473
    %v715 = vpop.f32.mrf.mxu0
    %v716 = vadd.f32 0.0, %v715
    %v717 = vpop.f32.mrf.mxu0
    %v718 = vpop.f32.mrf.mxu0
    %v719 = vadd.f32 0.0, %v718
    %v720 = vpop.f32.mrf.mxu0
    %721 = vmatprep.mubr.bf16.mxu0 %v476
    %722 = vmatmul.mubr.bf16.gmra.mxu0 %v475
    %v723 = vpop.f32.mrf.mxu0
    %v724 = vadd.f32 0.0, %v723
    %v725 = vpop.f32.mrf.mxu0
    %v726 = vpop.f32.mrf.mxu0
    %v727 = vadd.f32 0.0, %v726
    %v728 = vpop.f32.mrf.mxu0
    %729 = vmatprep.mubr.bf16.mxu0 %v478
    %730 = vmatmul.mubr.bf16.gmra.mxu0 %v477
    %v731 = vpop.f32.mrf.mxu0
    %v732 = vadd.f32 0.0, %v731
    %v733 = vpop.f32.mrf.mxu0
    %v734 = vpop.f32.mrf.mxu0
    %v735 = vadd.f32 0.0, %v734
    %v736 = vpop.f32.mrf.mxu0
    %737 = vmatprep.mubr.bf16.mxu0 %v480
    %738 = vmatmul.mubr.bf16.gmra.mxu0 %v479
    %v739 = vpop.f32.mrf.mxu0
    %v740 = vadd.f32 0.0, %v739
    %v741 = vpop.f32.mrf.mxu0
    %v742 = vpop.f32.mrf.mxu0
    %v743 = vadd.f32 0.0, %v742
    %v744 = vpop.f32.mrf.mxu0
    %745 = vmatprep.mubr.bf16.mxu0 %v482
    %746 = vmatmul.mubr.bf16.gmra.mxu0 %v481
    %v747 = vpop.f32.mrf.mxu0
    %v748 = vadd.f32 0.0, %v747
    %v749 = vpop.f32.mrf.mxu0
    %v750 = vpop.f32.mrf.mxu0
    %v751 = vadd.f32 0.0, %v750
    %v752 = vpop.f32.mrf.mxu0
    %753 = vmatprep.mubr.bf16.mxu0 %v484
    %754 = vmatmul.mubr.bf16.gmra.mxu0 %v483
    %v755 = vpop.f32.mrf.mxu0
    %v756 = vadd.f32 0.0, %v755
    %v757 = vpop.f32.mrf.mxu0
    %v758 = vpop.f32.mrf.mxu0
    %v759 = vadd.f32 0.0, %v758
    %v760 = vpop.f32.mrf.mxu0
    %761 = vmatprep.mubr.bf16.mxu0 %v486
    %762 = vmatmul.mubr.bf16.gmra.mxu0 %v485
    %v763 = vpop.f32.mrf.mxu0
    %v764 = vadd.f32 0.0, %v763
    %v765 = vpop.f32.mrf.mxu0
    %v766 = vpop.f32.mrf.mxu0
    %v767 = vadd.f32 0.0, %v766
    %v768 = vpop.f32.mrf.mxu0
    %769 = vmatprep.mubr.bf16.mxu0 %v488
    %770 = vmatmul.mubr.bf16.gmra.mxu0 %v487
    %v771 = vpop.f32.mrf.mxu0
    %v772 = vadd.f32 0.0, %v771
    %v773 = vpop.f32.mrf.mxu0
    %v774 = vpop.f32.mrf.mxu0
    %v775 = vadd.f32 0.0, %v774
    %v776 = vpop.f32.mrf.mxu0
    %777 = vdwg.mxu0
    %v778 = vpack.c.bf16 %v655, %v652
    %v779 = vpack.c.bf16 %v663, %v660
    %v780 = vpack.c.bf16 %v671, %v668
    %v781 = vpack.c.bf16 %v679, %v676
    %v782 = vpack.c.bf16 %v687, %v684
    %v783 = vpack.c.bf16 %v695, %v692
    %v784 = vpack.c.bf16 %v703, %v700
    %v785 = vpack.c.bf16 %v711, %v708
    %v786 = vpack.c.bf16 %v719, %v716
    %v787 = vpack.c.bf16 %v727, %v724
    %v788 = vpack.c.bf16 %v735, %v732
    %v789 = vpack.c.bf16 %v743, %v740
    %v790 = vpack.c.bf16 %v751, %v748
    %v791 = vpack.c.bf16 %v759, %v756
    %v792 = vpack.c.bf16 %v767, %v764
    %v793 = vpack.c.bf16 %v775, %v772
    %v810 = vunpack.c.l.b16 %v778
    %v811 = vunpack.c.h.b16 %v778
    %v812 = vunpack.c.l.b16 %v779
    %v813 = vunpack.c.h.b16 %v779
    %v814 = vunpack.c.l.b16 %v780
    %v815 = vunpack.c.h.b16 %v780
    %v816 = vunpack.c.l.b16 %v781
    %v817 = vunpack.c.h.b16 %v781
    %v818 = vunpack.c.l.b16 %v782
    %v819 = vunpack.c.h.b16 %v782
    %v820 = vunpack.c.l.b16 %v783
    %v821 = vunpack.c.h.b16 %v783
    %v822 = vunpack.c.l.b16 %v784
    %v823 = vunpack.c.h.b16 %v784
    %v824 = vunpack.c.l.b16 %v785
    %v825 = vunpack.c.h.b16 %v785
    %v826 = vunpack.c.l.b16 %v786
    %v827 = vunpack.c.h.b16 %v786
    %v828 = vunpack.c.l.b16 %v787
    %v829 = vunpack.c.h.b16 %v787
    %v830 = vunpack.c.l.b16 %v788
    %v831 = vunpack.c.h.b16 %v788
    %v832 = vunpack.c.l.b16 %v789
    %v833 = vunpack.c.h.b16 %v789
    %v834 = vunpack.c.l.b16 %v790
    %v835 = vunpack.c.h.b16 %v790
    %v836 = vunpack.c.l.b16 %v791
    %v837 = vunpack.c.h.b16 %v791
    %v838 = vunpack.c.l.b16 %v792
    %v839 = vunpack.c.h.b16 %v792
    %v840 = vunpack.c.l.b16 %v793
    %v841 = vunpack.c.h.b16 %v793
    %v842 = vpack.c.b16 %v810, %v810
    %v843 = vpack.c.b16 %v811, %v811
    %v844 = vpack.c.b16 %v812, %v812
    %v845 = vpack.c.b16 %v813, %v813
    %v846 = vpack.c.b16 %v814, %v814
    %v847 = vpack.c.b16 %v815, %v815
    %v848 = vpack.c.b16 %v816, %v816
    %v849 = vpack.c.b16 %v817, %v817
    %v850 = vpack.c.b16 %v818, %v818
    %v851 = vpack.c.b16 %v819, %v819
    %v852 = vpack.c.b16 %v820, %v820
    %v853 = vpack.c.b16 %v821, %v821
    %v854 = vpack.c.b16 %v822, %v822
    %v855 = vpack.c.b16 %v823, %v823
    %v856 = vpack.c.b16 %v824, %v824
    %v857 = vpack.c.b16 %v825, %v825
    %v858 = vpack.c.b16 %v826, %v826
    %v859 = vpack.c.b16 %v827, %v827
    %v860 = vpack.c.b16 %v828, %v828
    %v861 = vpack.c.b16 %v829, %v829
    %v862 = vpack.c.b16 %v830, %v830
    %v863 = vpack.c.b16 %v831, %v831
    %v864 = vpack.c.b16 %v832, %v832
    %v865 = vpack.c.b16 %v833, %v833
    %v866 = vpack.c.b16 %v834, %v834
    %v867 = vpack.c.b16 %v835, %v835
    %v868 = vpack.c.b16 %v836, %v836
    %v869 = vpack.c.b16 %v837, %v837
    %v870 = vpack.c.b16 %v838, %v838
    %v871 = vpack.c.b16 %v839, %v839
    %v872 = vpack.c.b16 %v840, %v840
    %v873 = vpack.c.b16 %v841, %v841
    %906 = vst [vmem:[#allocation2] sm:$0xf] %v842
    %907 = vst [vmem:[#allocation2 + $0x4] sm:$0xf] %v843
    %908 = vst [vmem:[#allocation2 + $0x8] sm:$0xf] %v844
    %909 = vst [vmem:[#allocation2 + $0xc] sm:$0xf] %v845
    %910 = vst [vmem:[#allocation2 + $0x10] sm:$0xf] %v846
    %911 = vst [vmem:[#allocation2 + $0x14] sm:$0xf] %v847
    %912 = vst [vmem:[#allocation2 + $0x18] sm:$0xf] %v848
    %913 = vst [vmem:[#allocation2 + $0x1c] sm:$0xf] %v849
    %914 = vst [vmem:[#allocation2 + $0x20] sm:$0xf] %v850
    %915 = vst [vmem:[#allocation2 + $0x24] sm:$0xf] %v851
    %916 = vst [vmem:[#allocation2 + $0x28] sm:$0xf] %v852
    %917 = vst [vmem:[#allocation2 + $0x2c] sm:$0xf] %v853
    %918 = vst [vmem:[#allocation2 + $0x30] sm:$0xf] %v854
    %919 = vst [vmem:[#allocation2 + $0x34] sm:$0xf] %v855
    %920 = vst [vmem:[#allocation2 + $0x38] sm:$0xf] %v856
    %921 = vst [vmem:[#allocation2 + $0x3c] sm:$0xf] %v857
    %922 = vst [vmem:[#allocation2 + $0x40] sm:$0xf] %v858
    %923 = vst [vmem:[#allocation2 + $0x44] sm:$0xf] %v859
    %924 = vst [vmem:[#allocation2 + $0x48] sm:$0xf] %v860
    %925 = vst [vmem:[#allocation2 + $0x4c] sm:$0xf] %v861
    %926 = vst [vmem:[#allocation2 + $0x50] sm:$0xf] %v862
    %927 = vst [vmem:[#allocation2 + $0x54] sm:$0xf] %v863
    %928 = vst [vmem:[#allocation2 + $0x58] sm:$0xf] %v864
    %929 = vst [vmem:[#allocation2 + $0x5c] sm:$0xf] %v865
    %930 = vst [vmem:[#allocation2 + $0x60] sm:$0xf] %v866
    %931 = vst [vmem:[#allocation2 + $0x64] sm:$0xf] %v867
    %932 = vst [vmem:[#allocation2 + $0x68] sm:$0xf] %v868
    %933 = vst [vmem:[#allocation2 + $0x6c] sm:$0xf] %v869
    %934 = vst [vmem:[#allocation2 + $0x70] sm:$0xf] %v870
    %935 = vst [vmem:[#allocation2 + $0x74] sm:$0xf] %v871
    %936 = vst [vmem:[#allocation2 + $0x78] sm:$0xf] %v872
    %937 = vst [vmem:[#allocation2 + $0x7c] sm:$0xf] %v873
    %v938 = vld [vmem:[#allocation8] sm:$0xff]
    %v939 = vld [vmem:[#allocation8 + $0x8] sm:$0xff]
    %v940 = vld [vmem:[#allocation8 + $0x10] sm:$0xff]
    %v941 = vld [vmem:[#allocation8 + $0x18] sm:$0xff]
    %v942 = vld [vmem:[#allocation8 + $0x20] sm:$0xff]
    %v943 = vld [vmem:[#allocation8 + $0x28] sm:$0xff]
    %v944 = vld [vmem:[#allocation8 + $0x30] sm:$0xff]
    %v945 = vld [vmem:[#allocation8 + $0x38] sm:$0xff]
    %v946 = vld [vmem:[#allocation8 + $0x40] sm:$0xff]
    %v947 = vld [vmem:[#allocation8 + $0x48] sm:$0xff]
    %v948 = vld [vmem:[#allocation8 + $0x50] sm:$0xff]
    %v949 = vld [vmem:[#allocation8 + $0x58] sm:$0xff]
    %v950 = vld [vmem:[#allocation8 + $0x60] sm:$0xff]
    %v951 = vld [vmem:[#allocation8 + $0x68] sm:$0xff]
    %v952 = vld [vmem:[#allocation8 + $0x70] sm:$0xff]
    %v953 = vld [vmem:[#allocation8 + $0x78] sm:$0xff]
    %v954 = vld [vmem:[#allocation8 + $0x80] sm:$0xff]
    %v955 = vld [vmem:[#allocation8 + $0x88] sm:$0xff]
    %v956 = vld [vmem:[#allocation8 + $0x90] sm:$0xff]
    %v957 = vld [vmem:[#allocation8 + $0x98] sm:$0xff]
    %v958 = vld [vmem:[#allocation8 + $0xa0] sm:$0xff]
    %v959 = vld [vmem:[#allocation8 + $0xa8] sm:$0xff]
    %v960 = vld [vmem:[#allocation8 + $0xb0] sm:$0xff]
    %v961 = vld [vmem:[#allocation8 + $0xb8] sm:$0xff]
    %v962 = vld [vmem:[#allocation8 + $0xc0] sm:$0xff]
    %v963 = vld [vmem:[#allocation8 + $0xc8] sm:$0xff]
    %v964 = vld [vmem:[#allocation8 + $0xd0] sm:$0xff]
    %v965 = vld [vmem:[#allocation8 + $0xd8] sm:$0xff]
    %v966 = vld [vmem:[#allocation8 + $0xe0] sm:$0xff]
    %v967 = vld [vmem:[#allocation8 + $0xe8] sm:$0xff]
    %v968 = vld [vmem:[#allocation8 + $0xf0] sm:$0xff]
    %v969 = vld [vmem:[#allocation8 + $0xf8] sm:$0xff]
    %v970 = vadd.f32 %v938, %v652
    %v971 = vadd.f32 %v939, %v655
    %v972 = vadd.f32 %v940, %v660
    %v973 = vadd.f32 %v941, %v663
    %v974 = vadd.f32 %v942, %v668
    %v975 = vadd.f32 %v943, %v671
    %v976 = vadd.f32 %v944, %v676
    %v977 = vadd.f32 %v945, %v679
    %v978 = vadd.f32 %v946, %v684
    %v979 = vadd.f32 %v947, %v687
    %v980 = vadd.f32 %v948, %v692
    %v981 = vadd.f32 %v949, %v695
    %v982 = vadd.f32 %v950, %v700
    %v983 = vadd.f32 %v951, %v703
    %v984 = vadd.f32 %v952, %v708
    %v985 = vadd.f32 %v953, %v711
    %v986 = vadd.f32 %v954, %v716
    %v987 = vadd.f32 %v955, %v719
    %v988 = vadd.f32 %v956, %v724
    %v989 = vadd.f32 %v957, %v727
    %v990 = vadd.f32 %v958, %v732
    %v991 = vadd.f32 %v959, %v735
    %v992 = vadd.f32 %v960, %v740
    %v993 = vadd.f32 %v961, %v743
    %v994 = vadd.f32 %v962, %v748
    %v995 = vadd.f32 %v963, %v751
    %v996 = vadd.f32 %v964, %v756
    %v997 = vadd.f32 %v965, %v759
    %v998 = vadd.f32 %v966, %v764
    %v999 = vadd.f32 %v967, %v767
    %v1000 = vadd.f32 %v968, %v772
    %v1001 = vadd.f32 %v969, %v775
    %1002 = vst [vmem:[#allocation8] sm:$0xff] %v970
    %1003 = vst [vmem:[#allocation8 + $0x8] sm:$0xff] %v971
    %1004 = vst [vmem:[#allocation8 + $0x10] sm:$0xff] %v972
    %1005 = vst [vmem:[#allocation8 + $0x18] sm:$0xff] %v973
    %1006 = vst [vmem:[#allocation8 + $0x20] sm:$0xff] %v974
    %1007 = vst [vmem:[#allocation8 + $0x28] sm:$0xff] %v975
    %1008 = vst [vmem:[#allocation8 + $0x30] sm:$0xff] %v976
    %1009 = vst [vmem:[#allocation8 + $0x38] sm:$0xff] %v977
    %1010 = vst [vmem:[#allocation8 + $0x40] sm:$0xff] %v978
    %1011 = vst [vmem:[#allocation8 + $0x48] sm:$0xff] %v979
    %1012 = vst [vmem:[#allocation8 + $0x50] sm:$0xff] %v980
    %1013 = vst [vmem:[#allocation8 + $0x58] sm:$0xff] %v981
    %1014 = vst [vmem:[#allocation8 + $0x60] sm:$0xff] %v982
    %1015 = vst [vmem:[#allocation8 + $0x68] sm:$0xff] %v983
    %1016 = vst [vmem:[#allocation8 + $0x70] sm:$0xff] %v984
    %1017 = vst [vmem:[#allocation8 + $0x78] sm:$0xff] %v985
    %1018 = vst [vmem:[#allocation8 + $0x80] sm:$0xff] %v986
    %1019 = vst [vmem:[#allocation8 + $0x88] sm:$0xff] %v987
    %1020 = vst [vmem:[#allocation8 + $0x90] sm:$0xff] %v988
    %1021 = vst [vmem:[#allocation8 + $0x98] sm:$0xff] %v989
    %1022 = vst [vmem:[#allocation8 + $0xa0] sm:$0xff] %v990
    %1023 = vst [vmem:[#allocation8 + $0xa8] sm:$0xff] %v991
    %1024 = vst [vmem:[#allocation8 + $0xb0] sm:$0xff] %v992
    %1025 = vst [vmem:[#allocation8 + $0xb8] sm:$0xff] %v993
    %1026 = vst [vmem:[#allocation8 + $0xc0] sm:$0xff] %v994
    %1027 = vst [vmem:[#allocation8 + $0xc8] sm:$0xff] %v995
    %1028 = vst [vmem:[#allocation8 + $0xd0] sm:$0xff] %v996
    %1029 = vst [vmem:[#allocation8 + $0xd8] sm:$0xff] %v997
    %1030 = vst [vmem:[#allocation8 + $0xe0] sm:$0xff] %v998
    %1031 = vst [vmem:[#allocation8 + $0xe8] sm:$0xff] %v999
    %1032 = vst [vmem:[#allocation8 + $0xf0] sm:$0xff] %v1000
    %1033 = vst [vmem:[#allocation8 + $0xf8] sm:$0xff] %v1001
    %v1034 = vld [vmem:[#allocation3] sm:$0xff]
    %v1035 = vld [vmem:[#allocation3 + $0x8] sm:$0xff]
    %v1036 = vld [vmem:[#allocation3 + $0x10] sm:$0xff]
    %v1037 = vld [vmem:[#allocation3 + $0x18] sm:$0xff]
    %v1038 = vld [vmem:[#allocation3 + $0x20] sm:$0xff]
    %v1039 = vld [vmem:[#allocation3 + $0x28] sm:$0xff]
    %v1040 = vld [vmem:[#allocation3 + $0x30] sm:$0xff]
    %v1041 = vld [vmem:[#allocation3 + $0x38] sm:$0xff]
    %v1042 = vld [vmem:[#allocation3 + $0x40] sm:$0xff]
    %v1043 = vld [vmem:[#allocation3 + $0x48] sm:$0xff]
    %v1044 = vld [vmem:[#allocation3 + $0x50] sm:$0xff]
    %v1045 = vld [vmem:[#allocation3 + $0x58] sm:$0xff]
    %v1046 = vld [vmem:[#allocation3 + $0x60] sm:$0xff]
    %v1047 = vld [vmem:[#allocation3 + $0x68] sm:$0xff]
    %v1048 = vld [vmem:[#allocation3 + $0x70] sm:$0xff]
    %v1049 = vld [vmem:[#allocation3 + $0x78] sm:$0xff]
    %v1050 = vld [vmem:[#allocation3 + $0x80] sm:$0xff]
    %v1051 = vld [vmem:[#allocation3 + $0x88] sm:$0xff]
    %v1052 = vld [vmem:[#allocation3 + $0x90] sm:$0xff]
    %v1053 = vld [vmem:[#allocation3 + $0x98] sm:$0xff]
    %v1054 = vld [vmem:[#allocation3 + $0xa0] sm:$0xff]
    %v1055 = vld [vmem:[#allocation3 + $0xa8] sm:$0xff]
    %v1056 = vld [vmem:[#allocation3 + $0xb0] sm:$0xff]
    %v1057 = vld [vmem:[#allocation3 + $0xb8] sm:$0xff]
    %v1058 = vld [vmem:[#allocation3 + $0xc0] sm:$0xff]
    %v1059 = vld [vmem:[#allocation3 + $0xc8] sm:$0xff]
    %v1060 = vld [vmem:[#allocation3 + $0xd0] sm:$0xff]
    %v1061 = vld [vmem:[#allocation3 + $0xd8] sm:$0xff]
    %v1062 = vld [vmem:[#allocation3 + $0xe0] sm:$0xff]
    %v1063 = vld [vmem:[#allocation3 + $0xe8] sm:$0xff]
    %v1064 = vld [vmem:[#allocation3 + $0xf0] sm:$0xff]
    %v1065 = vld [vmem:[#allocation3 + $0xf8] sm:$0xff]
    %v1066 = vld [vmem:[#allocation2] sm:$0xf]
    %v1067 = vld [vmem:[#allocation2 + $0x4] sm:$0xf]
    %v1068 = vld [vmem:[#allocation2 + $0x8] sm:$0xf]
    %v1069 = vld [vmem:[#allocation2 + $0xc] sm:$0xf]
    %v1070 = vld [vmem:[#allocation2 + $0x10] sm:$0xf]
    %v1071 = vld [vmem:[#allocation2 + $0x14] sm:$0xf]
    %v1072 = vld [vmem:[#allocation2 + $0x18] sm:$0xf]
    %v1073 = vld [vmem:[#allocation2 + $0x1c] sm:$0xf]
    %v1074 = vld [vmem:[#allocation2 + $0x20] sm:$0xf]
    %v1075 = vld [vmem:[#allocation2 + $0x24] sm:$0xf]
    %v1076 = vld [vmem:[#allocation2 + $0x28] sm:$0xf]
    %v1077 = vld [vmem:[#allocation2 + $0x2c] sm:$0xf]
    %v1078 = vld [vmem:[#allocation2 + $0x30] sm:$0xf]
    %v1079 = vld [vmem:[#allocation2 + $0x34] sm:$0xf]
    %v1080 = vld [vmem:[#allocation2 + $0x38] sm:$0xf]
    %v1081 = vld [vmem:[#allocation2 + $0x3c] sm:$0xf]
    %v1082 = vld [vmem:[#allocation2 + $0x40] sm:$0xf]
    %v1083 = vld [vmem:[#allocation2 + $0x44] sm:$0xf]
    %v1084 = vld [vmem:[#allocation2 + $0x48] sm:$0xf]
    %v1085 = vld [vmem:[#allocation2 + $0x4c] sm:$0xf]
    %v1086 = vld [vmem:[#allocation2 + $0x50] sm:$0xf]
    %v1087 = vld [vmem:[#allocation2 + $0x54] sm:$0xf]
    %v1088 = vld [vmem:[#allocation2 + $0x58] sm:$0xf]
    %v1089 = vld [vmem:[#allocation2 + $0x5c] sm:$0xf]
    %v1090 = vld [vmem:[#allocation2 + $0x60] sm:$0xf]
    %v1091 = vld [vmem:[#allocation2 + $0x64] sm:$0xf]
    %v1092 = vld [vmem:[#allocation2 + $0x68] sm:$0xf]
    %v1093 = vld [vmem:[#allocation2 + $0x6c] sm:$0xf]
    %v1094 = vld [vmem:[#allocation2 + $0x70] sm:$0xf]
    %v1095 = vld [vmem:[#allocation2 + $0x74] sm:$0xf]
    %v1096 = vld [vmem:[#allocation2 + $0x78] sm:$0xf]
    %v1097 = vld [vmem:[#allocation2 + $0x7c] sm:$0xf]
    %v1130 = vunpack.c.l.b16 %v1034
    %v1131 = vunpack.c.h.b16 %v1034
    %v1132 = vunpack.c.l.b16 %v1035
    %v1133 = vunpack.c.h.b16 %v1035
    %v1134 = vunpack.c.l.b16 %v1036
    %v1135 = vunpack.c.h.b16 %v1036
    %v1136 = vunpack.c.l.b16 %v1037
    %v1137 = vunpack.c.h.b16 %v1037
    %v1138 = vunpack.c.l.b16 %v1038
    %v1139 = vunpack.c.h.b16 %v1038
    %v1140 = vunpack.c.l.b16 %v1039
    %v1141 = vunpack.c.h.b16 %v1039
    %v1142 = vunpack.c.l.b16 %v1040
    %v1143 = vunpack.c.h.b16 %v1040
    %v1144 = vunpack.c.l.b16 %v1041
    %v1145 = vunpack.c.h.b16 %v1041
    %v1146 = vunpack.c.l.b16 %v1042
    %v1147 = vunpack.c.h.b16 %v1042
    %v1148 = vunpack.c.l.b16 %v1043
    %v1149 = vunpack.c.h.b16 %v1043
    %v1150 = vunpack.c.l.b16 %v1044
    %v1151 = vunpack.c.h.b16 %v1044
    %v1152 = vunpack.c.l.b16 %v1045
    %v1153 = vunpack.c.h.b16 %v1045
    %v1154 = vunpack.c.l.b16 %v1046
    %v1155 = vunpack.c.h.b16 %v1046
    %v1156 = vunpack.c.l.b16 %v1047
    %v1157 = vunpack.c.h.b16 %v1047
    %v1158 = vunpack.c.l.b16 %v1048
    %v1159 = vunpack.c.h.b16 %v1048
    %v1160 = vunpack.c.l.b16 %v1049
    %v1161 = vunpack.c.h.b16 %v1049
    %v1162 = vunpack.c.l.b16 %v1050
    %v1163 = vunpack.c.h.b16 %v1050
    %v1164 = vunpack.c.l.b16 %v1051
    %v1165 = vunpack.c.h.b16 %v1051
    %v1166 = vunpack.c.l.b16 %v1052
    %v1167 = vunpack.c.h.b16 %v1052
    %v1168 = vunpack.c.l.b16 %v1053
    %v1169 = vunpack.c.h.b16 %v1053
    %v1170 = vunpack.c.l.b16 %v1054
    %v1171 = vunpack.c.h.b16 %v1054
    %v1172 = vunpack.c.l.b16 %v1055
    %v1173 = vunpack.c.h.b16 %v1055
    %v1174 = vunpack.c.l.b16 %v1056
    %v1175 = vunpack.c.h.b16 %v1056
    %v1176 = vunpack.c.l.b16 %v1057
    %v1177 = vunpack.c.h.b16 %v1057
    %v1178 = vunpack.c.l.b16 %v1058
    %v1179 = vunpack.c.h.b16 %v1058
    %v1180 = vunpack.c.l.b16 %v1059
    %v1181 = vunpack.c.h.b16 %v1059
    %v1182 = vunpack.c.l.b16 %v1060
    %v1183 = vunpack.c.h.b16 %v1060
    %v1184 = vunpack.c.l.b16 %v1061
    %v1185 = vunpack.c.h.b16 %v1061
    %v1186 = vunpack.c.l.b16 %v1062
    %v1187 = vunpack.c.h.b16 %v1062
    %v1188 = vunpack.c.l.b16 %v1063
    %v1189 = vunpack.c.h.b16 %v1063
    %v1190 = vunpack.c.l.b16 %v1064
    %v1191 = vunpack.c.h.b16 %v1064
    %v1192 = vunpack.c.l.b16 %v1065
    %v1193 = vunpack.c.h.b16 %v1065
    %v1194 = vpack.c.b16 %v1132, %v1130
    %v1195 = vpack.c.b16 %v1133, %v1131
    %v1196 = vpack.c.b16 %v1136, %v1134
    %v1197 = vpack.c.b16 %v1137, %v1135
    %v1198 = vpack.c.b16 %v1140, %v1138
    %v1199 = vpack.c.b16 %v1141, %v1139
    %v1200 = vpack.c.b16 %v1144, %v1142
    %v1201 = vpack.c.b16 %v1145, %v1143
    %v1202 = vpack.c.b16 %v1148, %v1146
    %v1203 = vpack.c.b16 %v1149, %v1147
    %v1204 = vpack.c.b16 %v1152, %v1150
    %v1205 = vpack.c.b16 %v1153, %v1151
    %v1206 = vpack.c.b16 %v1156, %v1154
    %v1207 = vpack.c.b16 %v1157, %v1155
    %v1208 = vpack.c.b16 %v1160, %v1158
    %v1209 = vpack.c.b16 %v1161, %v1159
    %v1210 = vpack.c.b16 %v1164, %v1162
    %v1211 = vpack.c.b16 %v1165, %v1163
    %v1212 = vpack.c.b16 %v1168, %v1166
    %v1213 = vpack.c.b16 %v1169, %v1167
    %v1214 = vpack.c.b16 %v1172, %v1170
    %v1215 = vpack.c.b16 %v1173, %v1171
    %v1216 = vpack.c.b16 %v1176, %v1174
    %v1217 = vpack.c.b16 %v1177, %v1175
    %v1218 = vpack.c.b16 %v1180, %v1178
    %v1219 = vpack.c.b16 %v1181, %v1179
    %v1220 = vpack.c.b16 %v1184, %v1182
    %v1221 = vpack.c.b16 %v1185, %v1183
    %v1222 = vpack.c.b16 %v1188, %v1186
    %v1223 = vpack.c.b16 %v1189, %v1187
    %v1224 = vpack.c.b16 %v1192, %v1190
    %v1225 = vpack.c.b16 %v1193, %v1191
    %v1290 = vunpack.c.l.b16 %v1066
    %v1291 = vunpack.c.l.b16 %v1067
    %v1292 = vunpack.c.l.b16 %v1068
    %v1293 = vunpack.c.l.b16 %v1069
    %v1294 = vunpack.c.l.b16 %v1070
    %v1295 = vunpack.c.l.b16 %v1071
    %v1296 = vunpack.c.l.b16 %v1072
    %v1297 = vunpack.c.l.b16 %v1073
    %v1298 = vunpack.c.l.b16 %v1074
    %v1299 = vunpack.c.l.b16 %v1075
    %v1300 = vunpack.c.l.b16 %v1076
    %v1301 = vunpack.c.l.b16 %v1077
    %v1302 = vunpack.c.l.b16 %v1078
    %v1303 = vunpack.c.l.b16 %v1079
    %v1304 = vunpack.c.l.b16 %v1080
    %v1305 = vunpack.c.l.b16 %v1081
    %v1306 = vunpack.c.l.b16 %v1082
    %v1307 = vunpack.c.l.b16 %v1083
    %v1308 = vunpack.c.l.b16 %v1084
    %v1309 = vunpack.c.l.b16 %v1085
    %v1310 = vunpack.c.l.b16 %v1086
    %v1311 = vunpack.c.l.b16 %v1087
    %v1312 = vunpack.c.l.b16 %v1088
    %v1313 = vunpack.c.l.b16 %v1089
    %v1314 = vunpack.c.l.b16 %v1090
    %v1315 = vunpack.c.l.b16 %v1091
    %v1316 = vunpack.c.l.b16 %v1092
    %v1317 = vunpack.c.l.b16 %v1093
    %v1318 = vunpack.c.l.b16 %v1094
    %v1319 = vunpack.c.l.b16 %v1095
    %v1320 = vunpack.c.l.b16 %v1096
    %v1321 = vunpack.c.l.b16 %v1097
    %v1322 = vpack.c.b16 %v1291, %v1290
    %v1323 = vpack.c.b16 %v1293, %v1292
    %v1324 = vpack.c.b16 %v1295, %v1294
    %v1325 = vpack.c.b16 %v1297, %v1296
    %v1326 = vpack.c.b16 %v1299, %v1298
    %v1327 = vpack.c.b16 %v1301, %v1300
    %v1328 = vpack.c.b16 %v1303, %v1302
    %v1329 = vpack.c.b16 %v1305, %v1304
    %v1330 = vpack.c.b16 %v1307, %v1306
    %v1331 = vpack.c.b16 %v1309, %v1308
    %v1332 = vpack.c.b16 %v1311, %v1310
    %v1333 = vpack.c.b16 %v1313, %v1312
    %v1334 = vpack.c.b16 %v1315, %v1314
    %v1335 = vpack.c.b16 %v1317, %v1316
    %v1336 = vpack.c.b16 %v1319, %v1318
    %v1337 = vpack.c.b16 %v1321, %v1320
    %1354 = vmatprep.subr.bf16.mxu0 0
    %1355 = vmatpush1.bf16.msra.mxu0 %v1329
    %1356 = vmatprep.subr.bf16.mxu0 0
    %1357 = vmatpush1.bf16.msra.mxu0 %v1328
    %1358 = vmatprep.subr.bf16.mxu0 0
    %1359 = vmatpush1.bf16.msra.mxu0 %v1327
    %1360 = vmatprep.subr.bf16.mxu0 0
    %1361 = vmatpush1.bf16.msra.mxu0 %v1326
    %1362 = vmatprep.subr.bf16.mxu0 0
    %1363 = vmatpush1.bf16.msra.mxu0 %v1325
    %1364 = vmatprep.subr.bf16.mxu0 0
    %1365 = vmatpush1.bf16.msra.mxu0 %v1324
    %1366 = vmatprep.subr.bf16.mxu0 0
    %1367 = vmatpush1.bf16.msra.mxu0 %v1323
    %1368 = vmatprep.subr.bf16.mxu0 0
    %1369 = vmatpush1.bf16.msra.mxu0 %v1322
    %1370 = vmatprep.subr.bf16.mxu0 0
    %1371 = vmatpush2.bf16.msra.mxu0 %v1337
    %1372 = vmatprep.subr.bf16.mxu0 0
    %1373 = vmatpush2.bf16.msra.mxu0 %v1336
    %1374 = vmatprep.subr.bf16.mxu0 0
    %1375 = vmatpush2.bf16.msra.mxu0 %v1335
    %1376 = vmatprep.subr.bf16.mxu0 0
    %1377 = vmatpush2.bf16.msra.mxu0 %v1334
    %1378 = vmatprep.subr.bf16.mxu0 0
    %1379 = vmatpush2.bf16.msra.mxu0 %v1333
    %1380 = vmatprep.subr.bf16.mxu0 0
    %1381 = vmatpush2.bf16.msra.mxu0 %v1332
    %1382 = vmatprep.subr.bf16.mxu0 0
    %1383 = vmatpush2.bf16.msra.mxu0 %v1331
    %1384 = vmatprep.subr.bf16.mxu0 0
    %1385 = vmatpush2.bf16.msra.mxu0 %v1330
    %1386 = vmatprep.mubr.bf16.mxu0 %v1195
    %1387 = vmatmul.mubr.bf16.gmra.mxu0 %v1194
    %v1388 = vpop.f32.mrf.mxu0
    %v1389 = vadd.f32 0.0, %v1388
    %v1390 = vpop.f32.mrf.mxu0
    %v1391 = vpop.f32.mrf.mxu0
    %v1392 = vadd.f32 0.0, %v1391
    %v1393 = vpop.f32.mrf.mxu0
    %1394 = vmatprep.mubr.bf16.mxu0 %v1197
    %1395 = vmatmul.mubr.bf16.gmra.mxu0 %v1196
    %v1396 = vpop.f32.mrf.mxu0
    %v1397 = vadd.f32 0.0, %v1396
    %v1398 = vpop.f32.mrf.mxu0
    %v1399 = vpop.f32.mrf.mxu0
    %v1400 = vadd.f32 0.0, %v1399
    %v1401 = vpop.f32.mrf.mxu0
    %1402 = vmatprep.mubr.bf16.mxu0 %v1199
    %1403 = vmatmul.mubr.bf16.gmra.mxu0 %v1198
    %v1404 = vpop.f32.mrf.mxu0
    %v1405 = vadd.f32 0.0, %v1404
    %v1406 = vpop.f32.mrf.mxu0
    %v1407 = vpop.f32.mrf.mxu0
    %v1408 = vadd.f32 0.0, %v1407
    %v1409 = vpop.f32.mrf.mxu0
    %1410 = vmatprep.mubr.bf16.mxu0 %v1201
    %1411 = vmatmul.mubr.bf16.gmra.mxu0 %v1200
    %v1412 = vpop.f32.mrf.mxu0
    %v1413 = vadd.f32 0.0, %v1412
    %v1414 = vpop.f32.mrf.mxu0
    %v1415 = vpop.f32.mrf.mxu0
    %v1416 = vadd.f32 0.0, %v1415
    %v1417 = vpop.f32.mrf.mxu0
    %1418 = vmatprep.mubr.bf16.mxu0 %v1203
    %1419 = vmatmul.mubr.bf16.gmra.mxu0 %v1202
    %v1420 = vpop.f32.mrf.mxu0
    %v1421 = vadd.f32 0.0, %v1420
    %v1422 = vpop.f32.mrf.mxu0
    %v1423 = vpop.f32.mrf.mxu0
    %v1424 = vadd.f32 0.0, %v1423
    %v1425 = vpop.f32.mrf.mxu0
    %1426 = vmatprep.mubr.bf16.mxu0 %v1205
    %1427 = vmatmul.mubr.bf16.gmra.mxu0 %v1204
    %v1428 = vpop.f32.mrf.mxu0
    %v1429 = vadd.f32 0.0, %v1428
    %v1430 = vpop.f32.mrf.mxu0
    %v1431 = vpop.f32.mrf.mxu0
    %v1432 = vadd.f32 0.0, %v1431
    %v1433 = vpop.f32.mrf.mxu0
    %1434 = vmatprep.mubr.bf16.mxu0 %v1207
    %1435 = vmatmul.mubr.bf16.gmra.mxu0 %v1206
    %v1436 = vpop.f32.mrf.mxu0
    %v1437 = vadd.f32 0.0, %v1436
    %v1438 = vpop.f32.mrf.mxu0
    %v1439 = vpop.f32.mrf.mxu0
    %v1440 = vadd.f32 0.0, %v1439
    %v1441 = vpop.f32.mrf.mxu0
    %1442 = vmatprep.mubr.bf16.mxu0 %v1209
    %1443 = vmatmul.mubr.bf16.gmra.mxu0 %v1208
    %v1444 = vpop.f32.mrf.mxu0
    %v1445 = vadd.f32 0.0, %v1444
    %v1446 = vpop.f32.mrf.mxu0
    %v1447 = vpop.f32.mrf.mxu0
    %v1448 = vadd.f32 0.0, %v1447
    %v1449 = vpop.f32.mrf.mxu0
    %1450 = vmatprep.mubr.bf16.mxu0 %v1211
    %1451 = vmatmul.mubr.bf16.gmra.mxu0 %v1210
    %v1452 = vpop.f32.mrf.mxu0
    %v1453 = vadd.f32 0.0, %v1452
    %v1454 = vpop.f32.mrf.mxu0
    %v1455 = vpop.f32.mrf.mxu0
    %v1456 = vadd.f32 0.0, %v1455
    %v1457 = vpop.f32.mrf.mxu0
    %1458 = vmatprep.mubr.bf16.mxu0 %v1213
    %1459 = vmatmul.mubr.bf16.gmra.mxu0 %v1212
    %v1460 = vpop.f32.mrf.mxu0
    %v1461 = vadd.f32 0.0, %v1460
    %v1462 = vpop.f32.mrf.mxu0
    %v1463 = vpop.f32.mrf.mxu0
    %v1464 = vadd.f32 0.0, %v1463
    %v1465 = vpop.f32.mrf.mxu0
    %1466 = vmatprep.mubr.bf16.mxu0 %v1215
    %1467 = vmatmul.mubr.bf16.gmra.mxu0 %v1214
    %v1468 = vpop.f32.mrf.mxu0
    %v1469 = vadd.f32 0.0, %v1468
    %v1470 = vpop.f32.mrf.mxu0
    %v1471 = vpop.f32.mrf.mxu0
    %v1472 = vadd.f32 0.0, %v1471
    %v1473 = vpop.f32.mrf.mxu0
    %1474 = vmatprep.mubr.bf16.mxu0 %v1217
    %1475 = vmatmul.mubr.bf16.gmra.mxu0 %v1216
    %v1476 = vpop.f32.mrf.mxu0
    %v1477 = vadd.f32 0.0, %v1476
    %v1478 = vpop.f32.mrf.mxu0
    %v1479 = vpop.f32.mrf.mxu0
    %v1480 = vadd.f32 0.0, %v1479
    %v1481 = vpop.f32.mrf.mxu0
    %1482 = vmatprep.mubr.bf16.mxu0 %v1219
    %1483 = vmatmul.mubr.bf16.gmra.mxu0 %v1218
    %v1484 = vpop.f32.mrf.mxu0
    %v1485 = vadd.f32 0.0, %v1484
    %v1486 = vpop.f32.mrf.mxu0
    %v1487 = vpop.f32.mrf.mxu0
    %v1488 = vadd.f32 0.0, %v1487
    %v1489 = vpop.f32.mrf.mxu0
    %1490 = vmatprep.mubr.bf16.mxu0 %v1221
    %1491 = vmatmul.mubr.bf16.gmra.mxu0 %v1220
    %v1492 = vpop.f32.mrf.mxu0
    %v1493 = vadd.f32 0.0, %v1492
    %v1494 = vpop.f32.mrf.mxu0
    %v1495 = vpop.f32.mrf.mxu0
    %v1496 = vadd.f32 0.0, %v1495
    %v1497 = vpop.f32.mrf.mxu0
    %1498 = vmatprep.mubr.bf16.mxu0 %v1223
    %1499 = vmatmul.mubr.bf16.gmra.mxu0 %v1222
    %v1500 = vpop.f32.mrf.mxu0
    %v1501 = vadd.f32 0.0, %v1500
    %v1502 = vpop.f32.mrf.mxu0
    %v1503 = vpop.f32.mrf.mxu0
    %v1504 = vadd.f32 0.0, %v1503
    %v1505 = vpop.f32.mrf.mxu0
    %1506 = vmatprep.mubr.bf16.mxu0 %v1225
    %1507 = vmatmul.mubr.bf16.gmra.mxu0 %v1224
    %v1508 = vpop.f32.mrf.mxu0
    %v1509 = vadd.f32 0.0, %v1508
    %v1510 = vpop.f32.mrf.mxu0
    %v1511 = vpop.f32.mrf.mxu0
    %v1512 = vadd.f32 0.0, %v1511
    %v1513 = vpop.f32.mrf.mxu0
    %1514 = vdwg.mxu0
    %v1515 = vpack.c.bf16 %v1392, %v1389
    %v1516 = vpack.c.bf16 %v1400, %v1397
    %v1517 = vpack.c.bf16 %v1408, %v1405
    %v1518 = vpack.c.bf16 %v1416, %v1413
    %v1519 = vpack.c.bf16 %v1424, %v1421
    %v1520 = vpack.c.bf16 %v1432, %v1429
    %v1521 = vpack.c.bf16 %v1440, %v1437
    %v1522 = vpack.c.bf16 %v1448, %v1445
    %v1523 = vpack.c.bf16 %v1456, %v1453
    %v1524 = vpack.c.bf16 %v1464, %v1461
    %v1525 = vpack.c.bf16 %v1472, %v1469
    %v1526 = vpack.c.bf16 %v1480, %v1477
    %v1527 = vpack.c.bf16 %v1488, %v1485
    %v1528 = vpack.c.bf16 %v1496, %v1493
    %v1529 = vpack.c.bf16 %v1504, %v1501
    %v1530 = vpack.c.bf16 %v1512, %v1509
    %v1547 = vunpack.c.l.b16 %v1515
    %v1548 = vunpack.c.h.b16 %v1515
    %v1549 = vunpack.c.l.b16 %v1516
    %v1550 = vunpack.c.h.b16 %v1516
    %v1551 = vunpack.c.l.b16 %v1517
    %v1552 = vunpack.c.h.b16 %v1517
    %v1553 = vunpack.c.l.b16 %v1518
    %v1554 = vunpack.c.h.b16 %v1518
    %v1555 = vunpack.c.l.b16 %v1519
    %v1556 = vunpack.c.h.b16 %v1519
    %v1557 = vunpack.c.l.b16 %v1520
    %v1558 = vunpack.c.h.b16 %v1520
    %v1559 = vunpack.c.l.b16 %v1521
    %v1560 = vunpack.c.h.b16 %v1521
    %v1561 = vunpack.c.l.b16 %v1522
    %v1562 = vunpack.c.h.b16 %v1522
    %v1563 = vunpack.c.l.b16 %v1523
    %v1564 = vunpack.c.h.b16 %v1523
    %v1565 = vunpack.c.l.b16 %v1524
    %v1566 = vunpack.c.h.b16 %v1524
    %v1567 = vunpack.c.l.b16 %v1525
    %v1568 = vunpack.c.h.b16 %v1525
    %v1569 = vunpack.c.l.b16 %v1526
    %v1570 = vunpack.c.h.b16 %v1526
    %v1571 = vunpack.c.l.b16 %v1527
    %v1572 = vunpack.c.h.b16 %v1527
    %v1573 = vunpack.c.l.b16 %v1528
    %v1574 = vunpack.c.h.b16 %v1528
    %v1575 = vunpack.c.l.b16 %v1529
    %v1576 = vunpack.c.h.b16 %v1529
    %v1577 = vunpack.c.l.b16 %v1530
    %v1578 = vunpack.c.h.b16 %v1530
    %v1579 = vpack.c.b16 %v1547, %v1547
    %v1580 = vpack.c.b16 %v1548, %v1548
    %v1581 = vpack.c.b16 %v1549, %v1549
    %v1582 = vpack.c.b16 %v1550, %v1550
    %v1583 = vpack.c.b16 %v1551, %v1551
    %v1584 = vpack.c.b16 %v1552, %v1552
    %v1585 = vpack.c.b16 %v1553, %v1553
    %v1586 = vpack.c.b16 %v1554, %v1554
    %v1587 = vpack.c.b16 %v1555, %v1555
    %v1588 = vpack.c.b16 %v1556, %v1556
    %v1589 = vpack.c.b16 %v1557, %v1557
    %v1590 = vpack.c.b16 %v1558, %v1558
    %v1591 = vpack.c.b16 %v1559, %v1559
    %v1592 = vpack.c.b16 %v1560, %v1560
    %v1593 = vpack.c.b16 %v1561, %v1561
    %v1594 = vpack.c.b16 %v1562, %v1562
    %v1595 = vpack.c.b16 %v1563, %v1563
    %v1596 = vpack.c.b16 %v1564, %v1564
    %v1597 = vpack.c.b16 %v1565, %v1565
    %v1598 = vpack.c.b16 %v1566, %v1566
    %v1599 = vpack.c.b16 %v1567, %v1567
    %v1600 = vpack.c.b16 %v1568, %v1568
    %v1601 = vpack.c.b16 %v1569, %v1569
    %v1602 = vpack.c.b16 %v1570, %v1570
    %v1603 = vpack.c.b16 %v1571, %v1571
    %v1604 = vpack.c.b16 %v1572, %v1572
    %v1605 = vpack.c.b16 %v1573, %v1573
    %v1606 = vpack.c.b16 %v1574, %v1574
    %v1607 = vpack.c.b16 %v1575, %v1575
    %v1608 = vpack.c.b16 %v1576, %v1576
    %v1609 = vpack.c.b16 %v1577, %v1577
    %v1610 = vpack.c.b16 %v1578, %v1578
    %1643 = vst [vmem:[#allocation2] sm:$0xf] %v1579
    %1644 = vst [vmem:[#allocation2 + $0x4] sm:$0xf] %v1580
    %1645 = vst [vmem:[#allocation2 + $0x8] sm:$0xf] %v1581
    %1646 = vst [vmem:[#allocation2 + $0xc] sm:$0xf] %v1582
    %1647 = vst [vmem:[#allocation2 + $0x10] sm:$0xf] %v1583
    %1648 = vst [vmem:[#allocation2 + $0x14] sm:$0xf] %v1584
    %1649 = vst [vmem:[#allocation2 + $0x18] sm:$0xf] %v1585
    %1650 = vst [vmem:[#allocation2 + $0x1c] sm:$0xf] %v1586
    %1651 = vst [vmem:[#allocation2 + $0x20] sm:$0xf] %v1587
    %1652 = vst [vmem:[#allocation2 + $0x24] sm:$0xf] %v1588
    %1653 = vst [vmem:[#allocation2 + $0x28] sm:$0xf] %v1589
    %1654 = vst [vmem:[#allocation2 + $0x2c] sm:$0xf] %v1590
    %1655 = vst [vmem:[#allocation2 + $0x30] sm:$0xf] %v1591
    %1656 = vst [vmem:[#allocation2 + $0x34] sm:$0xf] %v1592
    %1657 = vst [vmem:[#allocation2 + $0x38] sm:$0xf] %v1593
    %1658 = vst [vmem:[#allocation2 + $0x3c] sm:$0xf] %v1594
    %1659 = vst [vmem:[#allocation2 + $0x40] sm:$0xf] %v1595
    %1660 = vst [vmem:[#allocation2 + $0x44] sm:$0xf] %v1596
    %1661 = vst [vmem:[#allocation2 + $0x48] sm:$0xf] %v1597
    %1662 = vst [vmem:[#allocation2 + $0x4c] sm:$0xf] %v1598
    %1663 = vst [vmem:[#allocation2 + $0x50] sm:$0xf] %v1599
    %1664 = vst [vmem:[#allocation2 + $0x54] sm:$0xf] %v1600
    %1665 = vst [vmem:[#allocation2 + $0x58] sm:$0xf] %v1601
    %1666 = vst [vmem:[#allocation2 + $0x5c] sm:$0xf] %v1602
    %1667 = vst [vmem:[#allocation2 + $0x60] sm:$0xf] %v1603
    %1668 = vst [vmem:[#allocation2 + $0x64] sm:$0xf] %v1604
    %1669 = vst [vmem:[#allocation2 + $0x68] sm:$0xf] %v1605
    %1670 = vst [vmem:[#allocation2 + $0x6c] sm:$0xf] %v1606
    %1671 = vst [vmem:[#allocation2 + $0x70] sm:$0xf] %v1607
    %1672 = vst [vmem:[#allocation2 + $0x74] sm:$0xf] %v1608
    %1673 = vst [vmem:[#allocation2 + $0x78] sm:$0xf] %v1609
    %1674 = vst [vmem:[#allocation2 + $0x7c] sm:$0xf] %v1610
    %v1675 = vld [vmem:[#allocation8] sm:$0xff]
    %v1676 = vld [vmem:[#allocation8 + $0x8] sm:$0xff]
    %v1677 = vld [vmem:[#allocation8 + $0x10] sm:$0xff]
    %v1678 = vld [vmem:[#allocation8 + $0x18] sm:$0xff]
    %v1679 = vld [vmem:[#allocation8 + $0x20] sm:$0xff]
    %v1680 = vld [vmem:[#allocation8 + $0x28] sm:$0xff]
    %v1681 = vld [vmem:[#allocation8 + $0x30] sm:$0xff]
    %v1682 = vld [vmem:[#allocation8 + $0x38] sm:$0xff]
    %v1683 = vld [vmem:[#allocation8 + $0x40] sm:$0xff]
    %v1684 = vld [vmem:[#allocation8 + $0x48] sm:$0xff]
    %v1685 = vld [vmem:[#allocation8 + $0x50] sm:$0xff]
    %v1686 = vld [vmem:[#allocation8 + $0x58] sm:$0xff]
    %v1687 = vld [vmem:[#allocation8 + $0x60] sm:$0xff]
    %v1688 = vld [vmem:[#allocation8 + $0x68] sm:$0xff]
    %v1689 = vld [vmem:[#allocation8 + $0x70] sm:$0xff]
    %v1690 = vld [vmem:[#allocation8 + $0x78] sm:$0xff]
    %v1691 = vld [vmem:[#allocation8 + $0x80] sm:$0xff]
    %v1692 = vld [vmem:[#allocation8 + $0x88] sm:$0xff]
    %v1693 = vld [vmem:[#allocation8 + $0x90] sm:$0xff]
    %v1694 = vld [vmem:[#allocation8 + $0x98] sm:$0xff]
    %v1695 = vld [vmem:[#allocation8 + $0xa0] sm:$0xff]
    %v1696 = vld [vmem:[#allocation8 + $0xa8] sm:$0xff]
    %v1697 = vld [vmem:[#allocation8 + $0xb0] sm:$0xff]
    %v1698 = vld [vmem:[#allocation8 + $0xb8] sm:$0xff]
    %v1699 = vld [vmem:[#allocation8 + $0xc0] sm:$0xff]
    %v1700 = vld [vmem:[#allocation8 + $0xc8] sm:$0xff]
    %v1701 = vld [vmem:[#allocation8 + $0xd0] sm:$0xff]
    %v1702 = vld [vmem:[#allocation8 + $0xd8] sm:$0xff]
    %v1703 = vld [vmem:[#allocation8 + $0xe0] sm:$0xff]
    %v1704 = vld [vmem:[#allocation8 + $0xe8] sm:$0xff]
    %v1705 = vld [vmem:[#allocation8 + $0xf0] sm:$0xff]
    %v1706 = vld [vmem:[#allocation8 + $0xf8] sm:$0xff]
    %v1707 = vadd.f32 %v1675, %v1389
    %v1708 = vadd.f32 %v1676, %v1392
    %v1709 = vadd.f32 %v1677, %v1397
    %v1710 = vadd.f32 %v1678, %v1400
    %v1711 = vadd.f32 %v1679, %v1405
    %v1712 = vadd.f32 %v1680, %v1408
    %v1713 = vadd.f32 %v1681, %v1413
    %v1714 = vadd.f32 %v1682, %v1416
    %v1715 = vadd.f32 %v1683, %v1421
    %v1716 = vadd.f32 %v1684, %v1424
    %v1717 = vadd.f32 %v1685, %v1429
    %v1718 = vadd.f32 %v1686, %v1432
    %v1719 = vadd.f32 %v1687, %v1437
    %v1720 = vadd.f32 %v1688, %v1440
    %v1721 = vadd.f32 %v1689, %v1445
    %v1722 = vadd.f32 %v1690, %v1448
    %v1723 = vadd.f32 %v1691, %v1453
    %v1724 = vadd.f32 %v1692, %v1456
    %v1725 = vadd.f32 %v1693, %v1461
    %v1726 = vadd.f32 %v1694, %v1464
    %v1727 = vadd.f32 %v1695, %v1469
    %v1728 = vadd.f32 %v1696, %v1472
    %v1729 = vadd.f32 %v1697, %v1477
    %v1730 = vadd.f32 %v1698, %v1480
    %v1731 = vadd.f32 %v1699, %v1485
    %v1732 = vadd.f32 %v1700, %v1488
    %v1733 = vadd.f32 %v1701, %v1493
    %v1734 = vadd.f32 %v1702, %v1496
    %v1735 = vadd.f32 %v1703, %v1501
    %v1736 = vadd.f32 %v1704, %v1504
    %v1737 = vadd.f32 %v1705, %v1509
    %v1738 = vadd.f32 %v1706, %v1512
    %1739 = vst [vmem:[#allocation8] sm:$0xff] %v1707
    %1740 = vst [vmem:[#allocation8 + $0x8] sm:$0xff] %v1708
    %1741 = vst [vmem:[#allocation8 + $0x10] sm:$0xff] %v1709
    %1742 = vst [vmem:[#allocation8 + $0x18] sm:$0xff] %v1710
    %1743 = vst [vmem:[#allocation8 + $0x20] sm:$0xff] %v1711
    %1744 = vst [vmem:[#allocation8 + $0x28] sm:$0xff] %v1712
    %1745 = vst [vmem:[#allocation8 + $0x30] sm:$0xff] %v1713
    %1746 = vst [vmem:[#allocation8 + $0x38] sm:$0xff] %v1714
    %1747 = vst [vmem:[#allocation8 + $0x40] sm:$0xff] %v1715
    %1748 = vst [vmem:[#allocation8 + $0x48] sm:$0xff] %v1716
    %1749 = vst [vmem:[#allocation8 + $0x50] sm:$0xff] %v1717
    %1750 = vst [vmem:[#allocation8 + $0x58] sm:$0xff] %v1718
    %1751 = vst [vmem:[#allocation8 + $0x60] sm:$0xff] %v1719
    %1752 = vst [vmem:[#allocation8 + $0x68] sm:$0xff] %v1720
    %1753 = vst [vmem:[#allocation8 + $0x70] sm:$0xff] %v1721
    %1754 = vst [vmem:[#allocation8 + $0x78] sm:$0xff] %v1722
    %1755 = vst [vmem:[#allocation8 + $0x80] sm:$0xff] %v1723
    %1756 = vst [vmem:[#allocation8 + $0x88] sm:$0xff] %v1724
    %1757 = vst [vmem:[#allocation8 + $0x90] sm:$0xff] %v1725
    %1758 = vst [vmem:[#allocation8 + $0x98] sm:$0xff] %v1726
    %1759 = vst [vmem:[#allocation8 + $0xa0] sm:$0xff] %v1727
    %1760 = vst [vmem:[#allocation8 + $0xa8] sm:$0xff] %v1728
    %1761 = vst [vmem:[#allocation8 + $0xb0] sm:$0xff] %v1729
    %1762 = vst [vmem:[#allocation8 + $0xb8] sm:$0xff] %v1730
    %1763 = vst [vmem:[#allocation8 + $0xc0] sm:$0xff] %v1731
    %1764 = vst [vmem:[#allocation8 + $0xc8] sm:$0xff] %v1732
    %1765 = vst [vmem:[#allocation8 + $0xd0] sm:$0xff] %v1733
    %1766 = vst [vmem:[#allocation8 + $0xd8] sm:$0xff] %v1734
    %1767 = vst [vmem:[#allocation8 + $0xe0] sm:$0xff] %v1735
    %1768 = vst [vmem:[#allocation8 + $0xe8] sm:$0xff] %v1736
    %1769 = vst [vmem:[#allocation8 + $0xf0] sm:$0xff] %v1737
    %1770 = vst [vmem:[#allocation8 + $0xf8] sm:$0xff] %v1738
    %v1771 = vld [vmem:[#allocation3] sm:$0xff]
    %v1772 = vld [vmem:[#allocation3 + $0x8] sm:$0xff]
    %v1773 = vld [vmem:[#allocation3 + $0x10] sm:$0xff]
    %v1774 = vld [vmem:[#allocation3 + $0x18] sm:$0xff]
    %v1775 = vld [vmem:[#allocation3 + $0x20] sm:$0xff]
    %v1776 = vld [vmem:[#allocation3 + $0x28] sm:$0xff]
    %v1777 = vld [vmem:[#allocation3 + $0x30] sm:$0xff]
    %v1778 = vld [vmem:[#allocation3 + $0x38] sm:$0xff]
    %v1779 = vld [vmem:[#allocation3 + $0x40] sm:$0xff]
    %v1780 = vld [vmem:[#allocation3 + $0x48] sm:$0xff]
    %v1781 = vld [vmem:[#allocation3 + $0x50] sm:$0xff]
    %v1782 = vld [vmem:[#allocation3 + $0x58] sm:$0xff]
    %v1783 = vld [vmem:[#allocation3 + $0x60] sm:$0xff]
    %v1784 = vld [vmem:[#allocation3 + $0x68] sm:$0xff]
    %v1785 = vld [vmem:[#allocation3 + $0x70] sm:$0xff]
    %v1786 = vld [vmem:[#allocation3 + $0x78] sm:$0xff]
    %v1787 = vld [vmem:[#allocation3 + $0x80] sm:$0xff]
    %v1788 = vld [vmem:[#allocation3 + $0x88] sm:$0xff]
    %v1789 = vld [vmem:[#allocation3 + $0x90] sm:$0xff]
    %v1790 = vld [vmem:[#allocation3 + $0x98] sm:$0xff]
    %v1791 = vld [vmem:[#allocation3 + $0xa0] sm:$0xff]
    %v1792 = vld [vmem:[#allocation3 + $0xa8] sm:$0xff]
    %v1793 = vld [vmem:[#allocation3 + $0xb0] sm:$0xff]
    %v1794 = vld [vmem:[#allocation3 + $0xb8] sm:$0xff]
    %v1795 = vld [vmem:[#allocation3 + $0xc0] sm:$0xff]
    %v1796 = vld [vmem:[#allocation3 + $0xc8] sm:$0xff]
    %v1797 = vld [vmem:[#allocation3 + $0xd0] sm:$0xff]
    %v1798 = vld [vmem:[#allocation3 + $0xd8] sm:$0xff]
    %v1799 = vld [vmem:[#allocation3 + $0xe0] sm:$0xff]
    %v1800 = vld [vmem:[#allocation3 + $0xe8] sm:$0xff]
    %v1801 = vld [vmem:[#allocation3 + $0xf0] sm:$0xff]
    %v1802 = vld [vmem:[#allocation3 + $0xf8] sm:$0xff]
    %v1803 = vld [vmem:[#allocation2] sm:$0xf]
    %v1804 = vld [vmem:[#allocation2 + $0x4] sm:$0xf]
    %v1805 = vld [vmem:[#allocation2 + $0x8] sm:$0xf]
    %v1806 = vld [vmem:[#allocation2 + $0xc] sm:$0xf]
    %v1807 = vld [vmem:[#allocation2 + $0x10] sm:$0xf]
    %v1808 = vld [vmem:[#allocation2 + $0x14] sm:$0xf]
    %v1809 = vld [vmem:[#allocation2 + $0x18] sm:$0xf]
    %v1810 = vld [vmem:[#allocation2 + $0x1c] sm:$0xf]
    %v1811 = vld [vmem:[#allocation2 + $0x20] sm:$0xf]
    %v1812 = vld [vmem:[#allocation2 + $0x24] sm:$0xf]
    %v1813 = vld [vmem:[#allocation2 + $0x28] sm:$0xf]
    %v1814 = vld [vmem:[#allocation2 + $0x2c] sm:$0xf]
    %v1815 = vld [vmem:[#allocation2 + $0x30] sm:$0xf]
    %v1816 = vld [vmem:[#allocation2 + $0x34] sm:$0xf]
    %v1817 = vld [vmem:[#allocation2 + $0x38] sm:$0xf]
    %v1818 = vld [vmem:[#allocation2 + $0x3c] sm:$0xf]
    %v1819 = vld [vmem:[#allocation2 + $0x40] sm:$0xf]
    %v1820 = vld [vmem:[#allocation2 + $0x44] sm:$0xf]
    %v1821 = vld [vmem:[#allocation2 + $0x48] sm:$0xf]
    %v1822 = vld [vmem:[#allocation2 + $0x4c] sm:$0xf]
    %v1823 = vld [vmem:[#allocation2 + $0x50] sm:$0xf]
    %v1824 = vld [vmem:[#allocation2 + $0x54] sm:$0xf]
    %v1825 = vld [vmem:[#allocation2 + $0x58] sm:$0xf]
    %v1826 = vld [vmem:[#allocation2 + $0x5c] sm:$0xf]
    %v1827 = vld [vmem:[#allocation2 + $0x60] sm:$0xf]
    %v1828 = vld [vmem:[#allocation2 + $0x64] sm:$0xf]
    %v1829 = vld [vmem:[#allocation2 + $0x68] sm:$0xf]
    %v1830 = vld [vmem:[#allocation2 + $0x6c] sm:$0xf]
    %v1831 = vld [vmem:[#allocation2 + $0x70] sm:$0xf]
    %v1832 = vld [vmem:[#allocation2 + $0x74] sm:$0xf]
    %v1833 = vld [vmem:[#allocation2 + $0x78] sm:$0xf]
    %v1834 = vld [vmem:[#allocation2 + $0x7c] sm:$0xf]
    %v1867 = vunpack.c.l.b16 %v1771
    %v1868 = vunpack.c.h.b16 %v1771
    %v1869 = vunpack.c.l.b16 %v1772
    %v1870 = vunpack.c.h.b16 %v1772
    %v1871 = vunpack.c.l.b16 %v1773
    %v1872 = vunpack.c.h.b16 %v1773
    %v1873 = vunpack.c.l.b16 %v1774
    %v1874 = vunpack.c.h.b16 %v1774
    %v1875 = vunpack.c.l.b16 %v1775
    %v1876 = vunpack.c.h.b16 %v1775
    %v1877 = vunpack.c.l.b16 %v1776
    %v1878 = vunpack.c.h.b16 %v1776
    %v1879 = vunpack.c.l.b16 %v1777
    %v1880 = vunpack.c.h.b16 %v1777
    %v1881 = vunpack.c.l.b16 %v1778
    %v1882 = vunpack.c.h.b16 %v1778
    %v1883 = vunpack.c.l.b16 %v1779
    %v1884 = vunpack.c.h.b16 %v1779
    %v1885 = vunpack.c.l.b16 %v1780
    %v1886 = vunpack.c.h.b16 %v1780
    %v1887 = vunpack.c.l.b16 %v1781
    %v1888 = vunpack.c.h.b16 %v1781
    %v1889 = vunpack.c.l.b16 %v1782
    %v1890 = vunpack.c.h.b16 %v1782
    %v1891 = vunpack.c.l.b16 %v1783
    %v1892 = vunpack.c.h.b16 %v1783
    %v1893 = vunpack.c.l.b16 %v1784
    %v1894 = vunpack.c.h.b16 %v1784
    %v1895 = vunpack.c.l.b16 %v1785
    %v1896 = vunpack.c.h.b16 %v1785
    %v1897 = vunpack.c.l.b16 %v1786
    %v1898 = vunpack.c.h.b16 %v1786
    %v1899 = vunpack.c.l.b16 %v1787
    %v1900 = vunpack.c.h.b16 %v1787
    %v1901 = vunpack.c.l.b16 %v1788
    %v1902 = vunpack.c.h.b16 %v1788
    %v1903 = vunpack.c.l.b16 %v1789
    %v1904 = vunpack.c.h.b16 %v1789
    %v1905 = vunpack.c.l.b16 %v1790
    %v1906 = vunpack.c.h.b16 %v1790
    %v1907 = vunpack.c.l.b16 %v1791
    %v1908 = vunpack.c.h.b16 %v1791
    %v1909 = vunpack.c.l.b16 %v1792
    %v1910 = vunpack.c.h.b16 %v1792
    %v1911 = vunpack.c.l.b16 %v1793
    %v1912 = vunpack.c.h.b16 %v1793
    %v1913 = vunpack.c.l.b16 %v1794
    %v1914 = vunpack.c.h.b16 %v1794
    %v1915 = vunpack.c.l.b16 %v1795
    %v1916 = vunpack.c.h.b16 %v1795
    %v1917 = vunpack.c.l.b16 %v1796
    %v1918 = vunpack.c.h.b16 %v1796
    %v1919 = vunpack.c.l.b16 %v1797
    %v1920 = vunpack.c.h.b16 %v1797
    %v1921 = vunpack.c.l.b16 %v1798
    %v1922 = vunpack.c.h.b16 %v1798
    %v1923 = vunpack.c.l.b16 %v1799
    %v1924 = vunpack.c.h.b16 %v1799
    %v1925 = vunpack.c.l.b16 %v1800
    %v1926 = vunpack.c.h.b16 %v1800
    %v1927 = vunpack.c.l.b16 %v1801
    %v1928 = vunpack.c.h.b16 %v1801
    %v1929 = vunpack.c.l.b16 %v1802
    %v1930 = vunpack.c.h.b16 %v1802
    %v1931 = vpack.c.b16 %v1869, %v1867
    %v1932 = vpack.c.b16 %v1870, %v1868
    %v1933 = vpack.c.b16 %v1873, %v1871
    %v1934 = vpack.c.b16 %v1874, %v1872
    %v1935 = vpack.c.b16 %v1877, %v1875
    %v1936 = vpack.c.b16 %v1878, %v1876
    %v1937 = vpack.c.b16 %v1881, %v1879
    %v1938 = vpack.c.b16 %v1882, %v1880
    %v1939 = vpack.c.b16 %v1885, %v1883
    %v1940 = vpack.c.b16 %v1886, %v1884
    %v1941 = vpack.c.b16 %v1889, %v1887
    %v1942 = vpack.c.b16 %v1890, %v1888
    %v1943 = vpack.c.b16 %v1893, %v1891
    %v1944 = vpack.c.b16 %v1894, %v1892
    %v1945 = vpack.c.b16 %v1897, %v1895
    %v1946 = vpack.c.b16 %v1898, %v1896
    %v1947 = vpack.c.b16 %v1901, %v1899
    %v1948 = vpack.c.b16 %v1902, %v1900
    %v1949 = vpack.c.b16 %v1905, %v1903
    %v1950 = vpack.c.b16 %v1906, %v1904
    %v1951 = vpack.c.b16 %v1909, %v1907
    %v1952 = vpack.c.b16 %v1910, %v1908
    %v1953 = vpack.c.b16 %v1913, %v1911
    %v1954 = vpack.c.b16 %v1914, %v1912
    %v1955 = vpack.c.b16 %v1917, %v1915
    %v1956 = vpack.c.b16 %v1918, %v1916
    %v1957 = vpack.c.b16 %v1921, %v1919
    %v1958 = vpack.c.b16 %v1922, %v1920
    %v1959 = vpack.c.b16 %v1925, %v1923
    %v1960 = vpack.c.b16 %v1926, %v1924
    %v1961 = vpack.c.b16 %v1929, %v1927
    %v1962 = vpack.c.b16 %v1930, %v1928
    %v2027 = vunpack.c.l.b16 %v1803
    %v2028 = vunpack.c.l.b16 %v1804
    %v2029 = vunpack.c.l.b16 %v1805
    %v2030 = vunpack.c.l.b16 %v1806
    %v2031 = vunpack.c.l.b16 %v1807
    %v2032 = vunpack.c.l.b16 %v1808
    %v2033 = vunpack.c.l.b16 %v1809
    %v2034 = vunpack.c.l.b16 %v1810
    %v2035 = vunpack.c.l.b16 %v1811
    %v2036 = vunpack.c.l.b16 %v1812
    %v2037 = vunpack.c.l.b16 %v1813
    %v2038 = vunpack.c.l.b16 %v1814
    %v2039 = vunpack.c.l.b16 %v1815
    %v2040 = vunpack.c.l.b16 %v1816
    %v2041 = vunpack.c.l.b16 %v1817
    %v2042 = vunpack.c.l.b16 %v1818
    %v2043 = vunpack.c.l.b16 %v1819
    %v2044 = vunpack.c.l.b16 %v1820
    %v2045 = vunpack.c.l.b16 %v1821
    %v2046 = vunpack.c.l.b16 %v1822
    %v2047 = vunpack.c.l.b16 %v1823
    %v2048 = vunpack.c.l.b16 %v1824
    %v2049 = vunpack.c.l.b16 %v1825
    %v2050 = vunpack.c.l.b16 %v1826
    %v2051 = vunpack.c.l.b16 %v1827
    %v2052 = vunpack.c.l.b16 %v1828
    %v2053 = vunpack.c.l.b16 %v1829
    %v2054 = vunpack.c.l.b16 %v1830
    %v2055 = vunpack.c.l.b16 %v1831
    %v2056 = vunpack.c.l.b16 %v1832
    %v2057 = vunpack.c.l.b16 %v1833
    %v2058 = vunpack.c.l.b16 %v1834
    %v2059 = vpack.c.b16 %v2028, %v2027
    %v2060 = vpack.c.b16 %v2030, %v2029
    %v2061 = vpack.c.b16 %v2032, %v2031
    %v2062 = vpack.c.b16 %v2034, %v2033
    %v2063 = vpack.c.b16 %v2036, %v2035
    %v2064 = vpack.c.b16 %v2038, %v2037
    %v2065 = vpack.c.b16 %v2040, %v2039
    %v2066 = vpack.c.b16 %v2042, %v2041
    %v2067 = vpack.c.b16 %v2044, %v2043
    %v2068 = vpack.c.b16 %v2046, %v2045
    %v2069 = vpack.c.b16 %v2048, %v2047
    %v2070 = vpack.c.b16 %v2050, %v2049
    %v2071 = vpack.c.b16 %v2052, %v2051
    %v2072 = vpack.c.b16 %v2054, %v2053
    %v2073 = vpack.c.b16 %v2056, %v2055
    %v2074 = vpack.c.b16 %v2058, %v2057
    %2091 = vmatprep.subr.bf16.mxu0 0
    %2092 = vmatpush1.bf16.msra.mxu0 %v2066
    %2093 = vmatprep.subr.bf16.mxu0 0
    %2094 = vmatpush1.bf16.msra.mxu0 %v2065
    %2095 = vmatprep.subr.bf16.mxu0 0
    %2096 = vmatpush1.bf16.msra.mxu0 %v2064
    %2097 = vmatprep.subr.bf16.mxu0 0
    %2098 = vmatpush1.bf16.msra.mxu0 %v2063
    %2099 = vmatprep.subr.bf16.mxu0 0
    %2100 = vmatpush1.bf16.msra.mxu0 %v2062
    %2101 = vmatprep.subr.bf16.mxu0 0
    %2102 = vmatpush1.bf16.msra.mxu0 %v2061
    %2103 = vmatprep.subr.bf16.mxu0 0
    %2104 = vmatpush1.bf16.msra.mxu0 %v2060
    %2105 = vmatprep.subr.bf16.mxu0 0
    %2106 = vmatpush1.bf16.msra.mxu0 %v2059
    %2107 = vmatprep.subr.bf16.mxu0 0
    %2108 = vmatpush2.bf16.msra.mxu0 %v2074
    %2109 = vmatprep.subr.bf16.mxu0 0
    %2110 = vmatpush2.bf16.msra.mxu0 %v2073
    %2111 = vmatprep.subr.bf16.mxu0 0
    %2112 = vmatpush2.bf16.msra.mxu0 %v2072
    %2113 = vmatprep.subr.bf16.mxu0 0
    %2114 = vmatpush2.bf16.msra.mxu0 %v2071
    %2115 = vmatprep.subr.bf16.mxu0 0
    %2116 = vmatpush2.bf16.msra.mxu0 %v2070
    %2117 = vmatprep.subr.bf16.mxu0 0
    %2118 = vmatpush2.bf16.msra.mxu0 %v2069
    %2119 = vmatprep.subr.bf16.mxu0 0
    %2120 = vmatpush2.bf16.msra.mxu0 %v2068
    %2121 = vmatprep.subr.bf16.mxu0 0
    %2122 = vmatpush2.bf16.msra.mxu0 %v2067
    %2123 = vmatprep.mubr.bf16.mxu0 %v1932
    %2124 = vmatmul.mubr.bf16.gmra.mxu0 %v1931
    %v2125 = vpop.f32.mrf.mxu0
    %v2126 = vadd.f32 0.0, %v2125
    %v2127 = vpop.f32.mrf.mxu0
    %v2128 = vpop.f32.mrf.mxu0
    %v2129 = vadd.f32 0.0, %v2128
    %v2130 = vpop.f32.mrf.mxu0
    %2131 = vmatprep.mubr.bf16.mxu0 %v1934
    %2132 = vmatmul.mubr.bf16.gmra.mxu0 %v1933
    %v2133 = vpop.f32.mrf.mxu0
    %v2134 = vadd.f32 0.0, %v2133
    %v2135 = vpop.f32.mrf.mxu0
    %v2136 = vpop.f32.mrf.mxu0
    %v2137 = vadd.f32 0.0, %v2136
    %v2138 = vpop.f32.mrf.mxu0
    %2139 = vmatprep.mubr.bf16.mxu0 %v1936
    %2140 = vmatmul.mubr.bf16.gmra.mxu0 %v1935
    %v2141 = vpop.f32.mrf.mxu0
    %v2142 = vadd.f32 0.0, %v2141
    %v2143 = vpop.f32.mrf.mxu0
    %v2144 = vpop.f32.mrf.mxu0
    %v2145 = vadd.f32 0.0, %v2144
    %v2146 = vpop.f32.mrf.mxu0
    %2147 = vmatprep.mubr.bf16.mxu0 %v1938
    %2148 = vmatmul.mubr.bf16.gmra.mxu0 %v1937
    %v2149 = vpop.f32.mrf.mxu0
    %v2150 = vadd.f32 0.0, %v2149
    %v2151 = vpop.f32.mrf.mxu0
    %v2152 = vpop.f32.mrf.mxu0
    %v2153 = vadd.f32 0.0, %v2152
    %v2154 = vpop.f32.mrf.mxu0
    %2155 = vmatprep.mubr.bf16.mxu0 %v1940
    %2156 = vmatmul.mubr.bf16.gmra.mxu0 %v1939
    %v2157 = vpop.f32.mrf.mxu0
    %v2158 = vadd.f32 0.0, %v2157
    %v2159 = vpop.f32.mrf.mxu0
    %v2160 = vpop.f32.mrf.mxu0
    %v2161 = vadd.f32 0.0, %v2160
    %v2162 = vpop.f32.mrf.mxu0
    %2163 = vmatprep.mubr.bf16.mxu0 %v1942
    %2164 = vmatmul.mubr.bf16.gmra.mxu0 %v1941
    %v2165 = vpop.f32.mrf.mxu0
    %v2166 = vadd.f32 0.0, %v2165
    %v2167 = vpop.f32.mrf.mxu0
    %v2168 = vpop.f32.mrf.mxu0
    %v2169 = vadd.f32 0.0, %v2168
    %v2170 = vpop.f32.mrf.mxu0
    %2171 = vmatprep.mubr.bf16.mxu0 %v1944
    %2172 = vmatmul.mubr.bf16.gmra.mxu0 %v1943
    %v2173 = vpop.f32.mrf.mxu0
    %v2174 = vadd.f32 0.0, %v2173
    %v2175 = vpop.f32.mrf.mxu0
    %v2176 = vpop.f32.mrf.mxu0
    %v2177 = vadd.f32 0.0, %v2176
    %v2178 = vpop.f32.mrf.mxu0
    %2179 = vmatprep.mubr.bf16.mxu0 %v1946
    %2180 = vmatmul.mubr.bf16.gmra.mxu0 %v1945
    %v2181 = vpop.f32.mrf.mxu0
    %v2182 = vadd.f32 0.0, %v2181
    %v2183 = vpop.f32.mrf.mxu0
    %v2184 = vpop.f32.mrf.mxu0
    %v2185 = vadd.f32 0.0, %v2184
    %v2186 = vpop.f32.mrf.mxu0
    %2187 = vmatprep.mubr.bf16.mxu0 %v1948
    %2188 = vmatmul.mubr.bf16.gmra.mxu0 %v1947
    %v2189 = vpop.f32.mrf.mxu0
    %v2190 = vadd.f32 0.0, %v2189
    %v2191 = vpop.f32.mrf.mxu0
    %v2192 = vpop.f32.mrf.mxu0
    %v2193 = vadd.f32 0.0, %v2192
    %v2194 = vpop.f32.mrf.mxu0
    %2195 = vmatprep.mubr.bf16.mxu0 %v1950
    %2196 = vmatmul.mubr.bf16.gmra.mxu0 %v1949
    %v2197 = vpop.f32.mrf.mxu0
    %v2198 = vadd.f32 0.0, %v2197
    %v2199 = vpop.f32.mrf.mxu0
    %v2200 = vpop.f32.mrf.mxu0
    %v2201 = vadd.f32 0.0, %v2200
    %v2202 = vpop.f32.mrf.mxu0
    %2203 = vmatprep.mubr.bf16.mxu0 %v1952
    %2204 = vmatmul.mubr.bf16.gmra.mxu0 %v1951
    %v2205 = vpop.f32.mrf.mxu0
    %v2206 = vadd.f32 0.0, %v2205
    %v2207 = vpop.f32.mrf.mxu0
    %v2208 = vpop.f32.mrf.mxu0
    %v2209 = vadd.f32 0.0, %v2208
    %v2210 = vpop.f32.mrf.mxu0
    %2211 = vmatprep.mubr.bf16.mxu0 %v1954
    %2212 = vmatmul.mubr.bf16.gmra.mxu0 %v1953
    %v2213 = vpop.f32.mrf.mxu0
    %v2214 = vadd.f32 0.0, %v2213
    %v2215 = vpop.f32.mrf.mxu0
    %v2216 = vpop.f32.mrf.mxu0
    %v2217 = vadd.f32 0.0, %v2216
    %v2218 = vpop.f32.mrf.mxu0
    %2219 = vmatprep.mubr.bf16.mxu0 %v1956
    %2220 = vmatmul.mubr.bf16.gmra.mxu0 %v1955
    %v2221 = vpop.f32.mrf.mxu0
    %v2222 = vadd.f32 0.0, %v2221
    %v2223 = vpop.f32.mrf.mxu0
    %v2224 = vpop.f32.mrf.mxu0
    %v2225 = vadd.f32 0.0, %v2224
    %v2226 = vpop.f32.mrf.mxu0
    %2227 = vmatprep.mubr.bf16.mxu0 %v1958
    %2228 = vmatmul.mubr.bf16.gmra.mxu0 %v1957
    %v2229 = vpop.f32.mrf.mxu0
    %v2230 = vadd.f32 0.0, %v2229
    %v2231 = vpop.f32.mrf.mxu0
    %v2232 = vpop.f32.mrf.mxu0
    %v2233 = vadd.f32 0.0, %v2232
    %v2234 = vpop.f32.mrf.mxu0
    %2235 = vmatprep.mubr.bf16.mxu0 %v1960
    %2236 = vmatmul.mubr.bf16.gmra.mxu0 %v1959
    %v2237 = vpop.f32.mrf.mxu0
    %v2238 = vadd.f32 0.0, %v2237
    %v2239 = vpop.f32.mrf.mxu0
    %v2240 = vpop.f32.mrf.mxu0
    %v2241 = vadd.f32 0.0, %v2240
    %v2242 = vpop.f32.mrf.mxu0
    %2243 = vmatprep.mubr.bf16.mxu0 %v1962
    %2244 = vmatmul.mubr.bf16.gmra.mxu0 %v1961
    %v2245 = vpop.f32.mrf.mxu0
    %v2246 = vadd.f32 0.0, %v2245
    %v2247 = vpop.f32.mrf.mxu0
    %v2248 = vpop.f32.mrf.mxu0
    %v2249 = vadd.f32 0.0, %v2248
    %v2250 = vpop.f32.mrf.mxu0
    %2251 = vdwg.mxu0
    %v2252 = vpack.c.bf16 %v2129, %v2126
    %v2253 = vpack.c.bf16 %v2137, %v2134
    %v2254 = vpack.c.bf16 %v2145, %v2142
    %v2255 = vpack.c.bf16 %v2153, %v2150
    %v2256 = vpack.c.bf16 %v2161, %v2158
    %v2257 = vpack.c.bf16 %v2169, %v2166
    %v2258 = vpack.c.bf16 %v2177, %v2174
    %v2259 = vpack.c.bf16 %v2185, %v2182
    %v2260 = vpack.c.bf16 %v2193, %v2190
    %v2261 = vpack.c.bf16 %v2201, %v2198
    %v2262 = vpack.c.bf16 %v2209, %v2206
    %v2263 = vpack.c.bf16 %v2217, %v2214
    %v2264 = vpack.c.bf16 %v2225, %v2222
    %v2265 = vpack.c.bf16 %v2233, %v2230
    %v2266 = vpack.c.bf16 %v2241, %v2238
    %v2267 = vpack.c.bf16 %v2249, %v2246
    %v2284 = vunpack.c.l.b16 %v2252
    %v2285 = vunpack.c.h.b16 %v2252
    %v2286 = vunpack.c.l.b16 %v2253
    %v2287 = vunpack.c.h.b16 %v2253
    %v2288 = vunpack.c.l.b16 %v2254
    %v2289 = vunpack.c.h.b16 %v2254
    %v2290 = vunpack.c.l.b16 %v2255
    %v2291 = vunpack.c.h.b16 %v2255
    %v2292 = vunpack.c.l.b16 %v2256
    %v2293 = vunpack.c.h.b16 %v2256
    %v2294 = vunpack.c.l.b16 %v2257
    %v2295 = vunpack.c.h.b16 %v2257
    %v2296 = vunpack.c.l.b16 %v2258
    %v2297 = vunpack.c.h.b16 %v2258
    %v2298 = vunpack.c.l.b16 %v2259
    %v2299 = vunpack.c.h.b16 %v2259
    %v2300 = vunpack.c.l.b16 %v2260
    %v2301 = vunpack.c.h.b16 %v2260
    %v2302 = vunpack.c.l.b16 %v2261
    %v2303 = vunpack.c.h.b16 %v2261
    %v2304 = vunpack.c.l.b16 %v2262
    %v2305 = vunpack.c.h.b16 %v2262
    %v2306 = vunpack.c.l.b16 %v2263
    %v2307 = vunpack.c.h.b16 %v2263
    %v2308 = vunpack.c.l.b16 %v2264
    %v2309 = vunpack.c.h.b16 %v2264
    %v2310 = vunpack.c.l.b16 %v2265
    %v2311 = vunpack.c.h.b16 %v2265
    %v2312 = vunpack.c.l.b16 %v2266
    %v2313 = vunpack.c.h.b16 %v2266
    %v2314 = vunpack.c.l.b16 %v2267
    %v2315 = vunpack.c.h.b16 %v2267
    %v2316 = vpack.c.b16 %v2284, %v2284
    %v2317 = vpack.c.b16 %v2285, %v2285
    %v2318 = vpack.c.b16 %v2286, %v2286
    %v2319 = vpack.c.b16 %v2287, %v2287
    %v2320 = vpack.c.b16 %v2288, %v2288
    %v2321 = vpack.c.b16 %v2289, %v2289
    %v2322 = vpack.c.b16 %v2290, %v2290
    %v2323 = vpack.c.b16 %v2291, %v2291
    %v2324 = vpack.c.b16 %v2292, %v2292
    %v2325 = vpack.c.b16 %v2293, %v2293
    %v2326 = vpack.c.b16 %v2294, %v2294
    %v2327 = vpack.c.b16 %v2295, %v2295
    %v2328 = vpack.c.b16 %v2296, %v2296
    %v2329 = vpack.c.b16 %v2297, %v2297
    %v2330 = vpack.c.b16 %v2298, %v2298
    %v2331 = vpack.c.b16 %v2299, %v2299
    %v2332 = vpack.c.b16 %v2300, %v2300
    %v2333 = vpack.c.b16 %v2301, %v2301
    %v2334 = vpack.c.b16 %v2302, %v2302
    %v2335 = vpack.c.b16 %v2303, %v2303
    %v2336 = vpack.c.b16 %v2304, %v2304
    %v2337 = vpack.c.b16 %v2305, %v2305
    %v2338 = vpack.c.b16 %v2306, %v2306
    %v2339 = vpack.c.b16 %v2307, %v2307
    %v2340 = vpack.c.b16 %v2308, %v2308
    %v2341 = vpack.c.b16 %v2309, %v2309
    %v2342 = vpack.c.b16 %v2310, %v2310
    %v2343 = vpack.c.b16 %v2311, %v2311
    %v2344 = vpack.c.b16 %v2312, %v2312
    %v2345 = vpack.c.b16 %v2313, %v2313
    %v2346 = vpack.c.b16 %v2314, %v2314
    %v2347 = vpack.c.b16 %v2315, %v2315
    %2380 = vst [vmem:[#allocation2] sm:$0xf] %v2316
    %2381 = vst [vmem:[#allocation2 + $0x4] sm:$0xf] %v2317
    %2382 = vst [vmem:[#allocation2 + $0x8] sm:$0xf] %v2318
    %2383 = vst [vmem:[#allocation2 + $0xc] sm:$0xf] %v2319
    %2384 = vst [vmem:[#allocation2 + $0x10] sm:$0xf] %v2320
    %2385 = vst [vmem:[#allocation2 + $0x14] sm:$0xf] %v2321
    %2386 = vst [vmem:[#allocation2 + $0x18] sm:$0xf] %v2322
    %2387 = vst [vmem:[#allocation2 + $0x1c] sm:$0xf] %v2323
    %2388 = vst [vmem:[#allocation2 + $0x20] sm:$0xf] %v2324
    %2389 = vst [vmem:[#allocation2 + $0x24] sm:$0xf] %v2325
    %2390 = vst [vmem:[#allocation2 + $0x28] sm:$0xf] %v2326
    %2391 = vst [vmem:[#allocation2 + $0x2c] sm:$0xf] %v2327
    %2392 = vst [vmem:[#allocation2 + $0x30] sm:$0xf] %v2328
    %2393 = vst [vmem:[#allocation2 + $0x34] sm:$0xf] %v2329
    %2394 = vst [vmem:[#allocation2 + $0x38] sm:$0xf] %v2330
    %2395 = vst [vmem:[#allocation2 + $0x3c] sm:$0xf] %v2331
    %2396 = vst [vmem:[#allocation2 + $0x40] sm:$0xf] %v2332
    %2397 = vst [vmem:[#allocation2 + $0x44] sm:$0xf] %v2333
    %2398 = vst [vmem:[#allocation2 + $0x48] sm:$0xf] %v2334
    %2399 = vst [vmem:[#allocation2 + $0x4c] sm:$0xf] %v2335
    %2400 = vst [vmem:[#allocation2 + $0x50] sm:$0xf] %v2336
    %2401 = vst [vmem:[#allocation2 + $0x54] sm:$0xf] %v2337
    %2402 = vst [vmem:[#allocation2 + $0x58] sm:$0xf] %v2338
    %2403 = vst [vmem:[#allocation2 + $0x5c] sm:$0xf] %v2339
    %2404 = vst [vmem:[#allocation2 + $0x60] sm:$0xf] %v2340
    %2405 = vst [vmem:[#allocation2 + $0x64] sm:$0xf] %v2341
    %2406 = vst [vmem:[#allocation2 + $0x68] sm:$0xf] %v2342
    %2407 = vst [vmem:[#allocation2 + $0x6c] sm:$0xf] %v2343
    %2408 = vst [vmem:[#allocation2 + $0x70] sm:$0xf] %v2344
    %2409 = vst [vmem:[#allocation2 + $0x74] sm:$0xf] %v2345
    %2410 = vst [vmem:[#allocation2 + $0x78] sm:$0xf] %v2346
    %2411 = vst [vmem:[#allocation2 + $0x7c] sm:$0xf] %v2347
    %v2412 = vld [vmem:[#allocation8] sm:$0xff]
    %v2413 = vld [vmem:[#allocation8 + $0x8] sm:$0xff]
    %v2414 = vld [vmem:[#allocation8 + $0x10] sm:$0xff]
    %v2415 = vld [vmem:[#allocation8 + $0x18] sm:$0xff]
    %v2416 = vld [vmem:[#allocation8 + $0x20] sm:$0xff]
    %v2417 = vld [vmem:[#allocation8 + $0x28] sm:$0xff]
    %v2418 = vld [vmem:[#allocation8 + $0x30] sm:$0xff]
    %v2419 = vld [vmem:[#allocation8 + $0x38] sm:$0xff]
    %v2420 = vld [vmem:[#allocation8 + $0x40] sm:$0xff]
    %v2421 = vld [vmem:[#allocation8 + $0x48] sm:$0xff]
    %v2422 = vld [vmem:[#allocation8 + $0x50] sm:$0xff]
    %v2423 = vld [vmem:[#allocation8 + $0x58] sm:$0xff]
    %v2424 = vld [vmem:[#allocation8 + $0x60] sm:$0xff]
    %v2425 = vld [vmem:[#allocation8 + $0x68] sm:$0xff]
    %v2426 = vld [vmem:[#allocation8 + $0x70] sm:$0xff]
    %v2427 = vld [vmem:[#allocation8 + $0x78] sm:$0xff]
    %v2428 = vld [vmem:[#allocation8 + $0x80] sm:$0xff]
    %v2429 = vld [vmem:[#allocation8 + $0x88] sm:$0xff]
    %v2430 = vld [vmem:[#allocation8 + $0x90] sm:$0xff]
    %v2431 = vld [vmem:[#allocation8 + $0x98] sm:$0xff]
    %v2432 = vld [vmem:[#allocation8 + $0xa0] sm:$0xff]
    %v2433 = vld [vmem:[#allocation8 + $0xa8] sm:$0xff]
    %v2434 = vld [vmem:[#allocation8 + $0xb0] sm:$0xff]
    %v2435 = vld [vmem:[#allocation8 + $0xb8] sm:$0xff]
    %v2436 = vld [vmem:[#allocation8 + $0xc0] sm:$0xff]
    %v2437 = vld [vmem:[#allocation8 + $0xc8] sm:$0xff]
    %v2438 = vld [vmem:[#allocation8 + $0xd0] sm:$0xff]
    %v2439 = vld [vmem:[#allocation8 + $0xd8] sm:$0xff]
    %v2440 = vld [vmem:[#allocation8 + $0xe0] sm:$0xff]
    %v2441 = vld [vmem:[#allocation8 + $0xe8] sm:$0xff]
    %v2442 = vld [vmem:[#allocation8 + $0xf0] sm:$0xff]
    %v2443 = vld [vmem:[#allocation8 + $0xf8] sm:$0xff]
    %v2444 = vadd.f32 %v2412, %v2126
    %v2445 = vadd.f32 %v2413, %v2129
    %v2446 = vadd.f32 %v2414, %v2134
    %v2447 = vadd.f32 %v2415, %v2137
    %v2448 = vadd.f32 %v2416, %v2142
    %v2449 = vadd.f32 %v2417, %v2145
    %v2450 = vadd.f32 %v2418, %v2150
    %v2451 = vadd.f32 %v2419, %v2153
    %v2452 = vadd.f32 %v2420, %v2158
    %v2453 = vadd.f32 %v2421, %v2161
    %v2454 = vadd.f32 %v2422, %v2166
    %v2455 = vadd.f32 %v2423, %v2169
    %v2456 = vadd.f32 %v2424, %v2174
    %v2457 = vadd.f32 %v2425, %v2177
    %v2458 = vadd.f32 %v2426, %v2182
    %v2459 = vadd.f32 %v2427, %v2185
    %v2460 = vadd.f32 %v2428, %v2190
    %v2461 = vadd.f32 %v2429, %v2193
    %v2462 = vadd.f32 %v2430, %v2198
    %v2463 = vadd.f32 %v2431, %v2201
    %v2464 = vadd.f32 %v2432, %v2206
    %v2465 = vadd.f32 %v2433, %v2209
    %v2466 = vadd.f32 %v2434, %v2214
    %v2467 = vadd.f32 %v2435, %v2217
    %v2468 = vadd.f32 %v2436, %v2222
    %v2469 = vadd.f32 %v2437, %v2225
    %v2470 = vadd.f32 %v2438, %v2230
    %v2471 = vadd.f32 %v2439, %v2233
    %v2472 = vadd.f32 %v2440, %v2238
    %v2473 = vadd.f32 %v2441, %v2241
    %v2474 = vadd.f32 %v2442, %v2246
    %v2475 = vadd.f32 %v2443, %v2249
    %2476 = vst [vmem:[#allocation8] sm:$0xff] %v2444
    %2477 = vst [vmem:[#allocation8 + $0x8] sm:$0xff] %v2445
    %2478 = vst [vmem:[#allocation8 + $0x10] sm:$0xff] %v2446
    %2479 = vst [vmem:[#allocation8 + $0x18] sm:$0xff] %v2447
    %2480 = vst [vmem:[#allocation8 + $0x20] sm:$0xff] %v2448
    %2481 = vst [vmem:[#allocation8 + $0x28] sm:$0xff] %v2449
    %2482 = vst [vmem:[#allocation8 + $0x30] sm:$0xff] %v2450
    %2483 = vst [vmem:[#allocation8 + $0x38] sm:$0xff] %v2451
    %2484 = vst [vmem:[#allocation8 + $0x40] sm:$0xff] %v2452
    %2485 = vst [vmem:[#allocation8 + $0x48] sm:$0xff] %v2453
    %2486 = vst [vmem:[#allocation8 + $0x50] sm:$0xff] %v2454
    %2487 = vst [vmem:[#allocation8 + $0x58] sm:$0xff] %v2455
    %2488 = vst [vmem:[#allocation8 + $0x60] sm:$0xff] %v2456
    %2489 = vst [vmem:[#allocation8 + $0x68] sm:$0xff] %v2457
    %2490 = vst [vmem:[#allocation8 + $0x70] sm:$0xff] %v2458
    %2491 = vst [vmem:[#allocation8 + $0x78] sm:$0xff] %v2459
    %2492 = vst [vmem:[#allocation8 + $0x80] sm:$0xff] %v2460
    %2493 = vst [vmem:[#allocation8 + $0x88] sm:$0xff] %v2461
    %2494 = vst [vmem:[#allocation8 + $0x90] sm:$0xff] %v2462
    %2495 = vst [vmem:[#allocation8 + $0x98] sm:$0xff] %v2463
    %2496 = vst [vmem:[#allocation8 + $0xa0] sm:$0xff] %v2464
    %2497 = vst [vmem:[#allocation8 + $0xa8] sm:$0xff] %v2465
    %2498 = vst [vmem:[#allocation8 + $0xb0] sm:$0xff] %v2466
    %2499 = vst [vmem:[#allocation8 + $0xb8] sm:$0xff] %v2467
    %2500 = vst [vmem:[#allocation8 + $0xc0] sm:$0xff] %v2468
    %2501 = vst [vmem:[#allocation8 + $0xc8] sm:$0xff] %v2469
    %2502 = vst [vmem:[#allocation8 + $0xd0] sm:$0xff] %v2470
    %2503 = vst [vmem:[#allocation8 + $0xd8] sm:$0xff] %v2471
    %2504 = vst [vmem:[#allocation8 + $0xe0] sm:$0xff] %v2472
    %2505 = vst [vmem:[#allocation8 + $0xe8] sm:$0xff] %v2473
    %2506 = vst [vmem:[#allocation8 + $0xf0] sm:$0xff] %v2474
    %2507 = vst [vmem:[#allocation8 + $0xf8] sm:$0xff] %v2475
    %v2508 = vld [vmem:[#allocation8] sm:$0xff]
    %v2509 = vld [vmem:[#allocation8 + $0x8] sm:$0xff]
    %v2510 = vld [vmem:[#allocation8 + $0x10] sm:$0xff]
    %v2511 = vld [vmem:[#allocation8 + $0x18] sm:$0xff]
    %v2512 = vld [vmem:[#allocation8 + $0x20] sm:$0xff]
    %v2513 = vld [vmem:[#allocation8 + $0x28] sm:$0xff]
    %v2514 = vld [vmem:[#allocation8 + $0x30] sm:$0xff]
    %v2515 = vld [vmem:[#allocation8 + $0x38] sm:$0xff]
    %v2516 = vld [vmem:[#allocation8 + $0x40] sm:$0xff]
    %v2517 = vld [vmem:[#allocation8 + $0x48] sm:$0xff]
    %v2518 = vld [vmem:[#allocation8 + $0x50] sm:$0xff]
    %v2519 = vld [vmem:[#allocation8 + $0x58] sm:$0xff]
    %v2520 = vld [vmem:[#allocation8 + $0x60] sm:$0xff]
    %v2521 = vld [vmem:[#allocation8 + $0x68] sm:$0xff]
    %v2522 = vld [vmem:[#allocation8 + $0x70] sm:$0xff]
    %v2523 = vld [vmem:[#allocation8 + $0x78] sm:$0xff]
    %v2524 = vld [vmem:[#allocation8 + $0x80] sm:$0xff]
    %v2525 = vld [vmem:[#allocation8 + $0x88] sm:$0xff]
    %v2526 = vld [vmem:[#allocation8 + $0x90] sm:$0xff]
    %v2527 = vld [vmem:[#allocation8 + $0x98] sm:$0xff]
    %v2528 = vld [vmem:[#allocation8 + $0xa0] sm:$0xff]
    %v2529 = vld [vmem:[#allocation8 + $0xa8] sm:$0xff]
    %v2530 = vld [vmem:[#allocation8 + $0xb0] sm:$0xff]
    %v2531 = vld [vmem:[#allocation8 + $0xb8] sm:$0xff]
    %v2532 = vld [vmem:[#allocation8 + $0xc0] sm:$0xff]
    %v2533 = vld [vmem:[#allocation8 + $0xc8] sm:$0xff]
    %v2534 = vld [vmem:[#allocation8 + $0xd0] sm:$0xff]
    %v2535 = vld [vmem:[#allocation8 + $0xd8] sm:$0xff]
    %v2536 = vld [vmem:[#allocation8 + $0xe0] sm:$0xff]
    %v2537 = vld [vmem:[#allocation8 + $0xe8] sm:$0xff]
    %v2538 = vld [vmem:[#allocation8 + $0xf0] sm:$0xff]
    %v2539 = vld [vmem:[#allocation8 + $0xf8] sm:$0xff]
    %v2540 = vmul.f32 %v2508, 0.25
    %v2541 = vmul.f32 %v2509, 0.25
    %v2542 = vmul.f32 %v2510, 0.25
    %v2543 = vmul.f32 %v2511, 0.25
    %v2544 = vmul.f32 %v2512, 0.25
    %v2545 = vmul.f32 %v2513, 0.25
    %v2546 = vmul.f32 %v2514, 0.25
    %v2547 = vmul.f32 %v2515, 0.25
    %v2548 = vmul.f32 %v2516, 0.25
    %v2549 = vmul.f32 %v2517, 0.25
    %v2550 = vmul.f32 %v2518, 0.25
    %v2551 = vmul.f32 %v2519, 0.25
    %v2552 = vmul.f32 %v2520, 0.25
    %v2553 = vmul.f32 %v2521, 0.25
    %v2554 = vmul.f32 %v2522, 0.25
    %v2555 = vmul.f32 %v2523, 0.25
    %v2556 = vmul.f32 %v2524, 0.25
    %v2557 = vmul.f32 %v2525, 0.25
    %v2558 = vmul.f32 %v2526, 0.25
    %v2559 = vmul.f32 %v2527, 0.25
    %v2560 = vmul.f32 %v2528, 0.25
    %v2561 = vmul.f32 %v2529, 0.25
    %v2562 = vmul.f32 %v2530, 0.25
    %v2563 = vmul.f32 %v2531, 0.25
    %v2564 = vmul.f32 %v2532, 0.25
    %v2565 = vmul.f32 %v2533, 0.25
    %v2566 = vmul.f32 %v2534, 0.25
    %v2567 = vmul.f32 %v2535, 0.25
    %v2568 = vmul.f32 %v2536, 0.25
    %v2569 = vmul.f32 %v2537, 0.25
    %v2570 = vmul.f32 %v2538, 0.25
    %v2571 = vmul.f32 %v2539, 0.25
    %2572 = vst [vmem:[#allocation8] sm:$0xff] %v2540
    %2573 = vst [vmem:[#allocation8 + $0x8] sm:$0xff] %v2541
    %2574 = vst [vmem:[#allocation8 + $0x10] sm:$0xff] %v2542
    %2575 = vst [vmem:[#allocation8 + $0x18] sm:$0xff] %v2543
    %2576 = vst [vmem:[#allocation8 + $0x20] sm:$0xff] %v2544
    %2577 = vst [vmem:[#allocation8 + $0x28] sm:$0xff] %v2545
    %2578 = vst [vmem:[#allocation8 + $0x30] sm:$0xff] %v2546
    %2579 = vst [vmem:[#allocation8 + $0x38] sm:$0xff] %v2547
    %2580 = vst [vmem:[#allocation8 + $0x40] sm:$0xff] %v2548
    %2581 = vst [vmem:[#allocation8 + $0x48] sm:$0xff] %v2549
    %2582 = vst [vmem:[#allocation8 + $0x50] sm:$0xff] %v2550
    %2583 = vst [vmem:[#allocation8 + $0x58] sm:$0xff] %v2551
    %2584 = vst [vmem:[#allocation8 + $0x60] sm:$0xff] %v2552
    %2585 = vst [vmem:[#allocation8 + $0x68] sm:$0xff] %v2553
    %2586 = vst [vmem:[#allocation8 + $0x70] sm:$0xff] %v2554
    %2587 = vst [vmem:[#allocation8 + $0x78] sm:$0xff] %v2555
    %2588 = vst [vmem:[#allocation8 + $0x80] sm:$0xff] %v2556
    %2589 = vst [vmem:[#allocation8 + $0x88] sm:$0xff] %v2557
    %2590 = vst [vmem:[#allocation8 + $0x90] sm:$0xff] %v2558
    %2591 = vst [vmem:[#allocation8 + $0x98] sm:$0xff] %v2559
    %2592 = vst [vmem:[#allocation8 + $0xa0] sm:$0xff] %v2560
    %2593 = vst [vmem:[#allocation8 + $0xa8] sm:$0xff] %v2561
    %2594 = vst [vmem:[#allocation8 + $0xb0] sm:$0xff] %v2562
    %2595 = vst [vmem:[#allocation8 + $0xb8] sm:$0xff] %v2563
    %2596 = vst [vmem:[#allocation8 + $0xc0] sm:$0xff] %v2564
    %2597 = vst [vmem:[#allocation8 + $0xc8] sm:$0xff] %v2565
    %2598 = vst [vmem:[#allocation8 + $0xd0] sm:$0xff] %v2566
    %2599 = vst [vmem:[#allocation8 + $0xd8] sm:$0xff] %v2567
    %2600 = vst [vmem:[#allocation8 + $0xe0] sm:$0xff] %v2568
    %2601 = vst [vmem:[#allocation8 + $0xe8] sm:$0xff] %v2569
    %2602 = vst [vmem:[#allocation8 + $0xf0] sm:$0xff] %v2570
    %2603 = vst [vmem:[#allocation8 + $0xf8] sm:$0xff] %v2571
    // Predicated region
    $region18: #{tpu_custom_call.1} parent=1 // pred_check
      _
    $region19: #{tpu_custom_call.1} parent=1 // pred_check_branch
      %2605 = sbr.rel (0) target = $region21
    $region20: #{tpu_custom_call.1} parent=1 // pred_region
      %s2607 = ssub.s32 4096, 4096
      %2608 = vsyncadd [#allocation5], %s2607
      %s2609 = sshll.u32 [#allocation8], 4
      %s2610 = int_to_ptr.vmem [resolvable:$true] %s2609
      %2615 = dma.vmem_to_hbm [thread:$0]  %s2610, 4096, %s2, [#allocation5], 128, 128, 8
    $region21: #{tpu_custom_call.1} parent=1 // pred_fallthru
      _
    // Predicated region
    $region22: #{tpu_custom_call.1} parent=1 // pred_check
      _
    $region23: #{tpu_custom_call.1} parent=1 // pred_check_branch
      %2617 = sbr.rel (0) target = $region25
    $region24: #{tpu_custom_call.1} parent=1 // pred_region
      %2618 = dma.done [#allocation5], 4096
    $region25: #{tpu_custom_call.1} parent=1 // pred_fallthru
      _
    %2619 = vsyncpa [#allocation4], 1
    %2620 = vsyncpa [#allocation7], 1
    %2621 = vsyncpa [#allocation5], 1

</llo_original>
